<compile_context>
chip_gen: v7x
topology: tpu7x:2x2x1
jax: 0.10.0
libtpu: 0.0.40
codegen_flags: <defaults>
</compile_context>

<pallas_src>
import functools

import jax
import jax.numpy as jnp
from jax.experimental import pallas as pl
from jax.experimental.pallas import tpu as pltpu

MAX_ITER = 10
TOL = 1e-10


def _cg_kernel(rhsr_ref, rhsi_ref, md_ref, or_ref, oi_ref, *, max_iter, tol, unroll):
    n = pl.program_id(0)
    B, N = rhsr_ref.shape

    # TODO(synk): for large B, skip the multiply-by-zero work on rows < n by
    # chunking the batch dim into sublane groups under pl.when (O(B^2 N) -> ~half);
    # irrelevant at the small B used here.
    row_ids = jax.lax.broadcasted_iota(jnp.int32, (B, N), 0)
    rmask = (row_ids >= n).astype(jnp.float32)        # realises the x[n:] slice

    md = md_ref[...]                                  # real diagonal of M

    # r0 = p0 = rhs restricted to the tail slice [n:]; rows < n stay exactly 0
    # through the whole solve (M diagonal), so full-plane dot products equal the
    # tail-slice dot products of the reference.
    r0r = rhsr_ref[...] * rmask
    r0i = rhsi_ref[...] * rmask
    rtr0 = jnp.sum(r0r * r0r + r0i * r0i)             # torch.norm(r)**2

    # Row-n local state (the only row that is emitted).  M is diagonal, so row n
    # evolves independently given the scalar alpha/beta sequence; its updates
    # below are bit-identical to row n of the full-plane updates.
    md_row = md_ref[pl.ds(n, 1), :]                   # (1, N)
    r0r_row = rhsr_ref[pl.ds(n, 1), :]
    r0i_row = rhsi_ref[pl.ds(n, 1), :]
    zrow = jnp.zeros((1, N), jnp.float32)

    def body(_, carry):
        (rr, ri, pr, pi, rtr,
         xr_row, xi_row, rr_row, ri_row, pr_row, pi_row) = carry

        active = rtr > tol                            # emulates `while rTr > tol`
        act = active.astype(jnp.float32)

        q_r = md * pr
        q_i = md * pi

        # Fused reduction phase: all three depend only on (p, q, r), no scalar
        # round-trip between them.  M real-diagonal => they are all real.
        pq = jnp.sum(pr * q_r + pi * q_i)
        rq = jnp.sum(rr * q_r + ri * q_i)
        qq = jnp.sum(q_r * q_r + q_i * q_i)

        pq_safe = jnp.where(pq != 0.0, pq, 1.0)       # NaN-proof denominators
        a = jnp.where(active, rtr / pq_safe, 0.0)     # alpha, 0 when frozen

        nrr = rr - a * q_r
        nri = ri - a * q_i
        # ||r_new||^2 = rtr - 2a<r,q> + a^2<q,q>  (== rtr exactly when a == 0)
        rtr_new = rtr - 2.0 * a * rq + a * a * qq

        rtr_safe = jnp.where(rtr != 0.0, rtr, 1.0)
        beta = jnp.where(active, rtr_new / rtr_safe, 1.0)

        npr = act * nrr + beta * pr                   # p frozen when inactive
        npi = act * nri + beta * pi

        # Row-n local updates with the same scalars (cheap: 1/B of a plane).
        qr_row = md_row * pr_row
        qi_row = md_row * pi_row
        nxr_row = xr_row + a * pr_row
        nxi_row = xi_row + a * pi_row
        nrr_row = rr_row - a * qr_row
        nri_row = ri_row - a * qi_row
        npr_row = act * nrr_row + beta * pr_row
        npi_row = act * nri_row + beta * pi_row

        return (nrr, nri, npr, npi, rtr_new,
                nxr_row, nxi_row, nrr_row, nri_row, npr_row, npi_row)

    carry = (r0r, r0i, r0r, r0i, rtr0,
             zrow, zrow, r0r_row, r0i_row, r0r_row, r0i_row)
    carry = jax.lax.fori_loop(0, max_iter, body, carry, unroll=unroll)

    # out[n] = cg_out[0]  ->  the row-n solution, written as the per-row output
    # block (no hit-mask extraction, no read-modify-write).
    or_ref[...] = carry[5].reshape(1, 1, N)
    oi_ref[...] = carry[6].reshape(1, 1, N)


def _pick_vmem_limit(plane_bytes):
    # Footprint: 3 resident input planes (double-buffered by default) + ~10 live
    # carry/temp planes in the CG loop + small row/output blocks + margin.
    need = plane_bytes * (3 * 2 + 10) + (2 << 20)
    try:
        phys = pltpu.get_tpu_info().vmem_capacity_bytes   # 64 MiB v7x, 128 MiB v5e/v6e
    except Exception:
        phys = 64 * 1024 * 1024                           # conservative (v7x) fallback
    cap = phys - phys // 8                                # ~12.5% headroom for compiler scratch
    return int(min(cap, max(16 * 1024 * 1024, need)))


def cg_class_forward(lambdaa, x, y, csm, mask, mu, *, max_iter=MAX_ITER, tol=TOL):
    """Pallas implementation of CGClass.forward with the masked-sensitivity A/AH."""
    # TODO(synk): `mu` is forwarded as a constant but unused by this A/AH pair
    # (as in the reference, which merely passes it through to the operators).
    del mu
    B, H, W = x.shape
    N = H * W
    f32 = jnp.float32

    lam = jnp.asarray(lambdaa, f32)
    m = mask.astype(f32)

    # Hoisted precompute (identical for every grid step):
    #   AH(y) = sum_c conj(csm_c) * mask * y_c
    #   diag  = sum_c |csm_c|^2 * mask^2       (diagonal of AH(A(.)))
    #   rhs   = AH(y) + lambda * x ,  Mdiag = diag + lambda
    ahy = jnp.sum(jnp.conj(csm) * (m[None, None] * y), axis=1)          # (B,H,W) c64
    diag = jnp.sum(jnp.real(csm) ** 2 + jnp.imag(csm) ** 2, axis=1) * (m * m)[None]
    rhs = ahy + lam * x
    rhs_r = jnp.real(rhs).reshape(B, N).astype(f32)
    rhs_i = jnp.imag(rhs).reshape(B, N).astype(f32)
    mdiag = (diag + lam).reshape(B, N).astype(f32)

    # Pad the lane dim to a multiple of 128 (lane-dense stores / clean layouts).
    Np = ((N + 127) // 128) * 128
    if Np != N:
        pad = Np - N
        rhs_r = jnp.pad(rhs_r, ((0, 0), (0, pad)))            # padded rhs = 0 ->
        rhs_i = jnp.pad(rhs_i, ((0, 0), (0, pad)))            # padded lanes stay 0
        mdiag = jnp.pad(mdiag, ((0, 0), (0, pad)), constant_values=1.0)

    plane_bytes = B * Np * 4
    # Fully unroll only when planes are small (latency-bound); rolled loop for
    # MiB-scale planes keeps live VMEM temporaries bounded.
    unroll = bool(plane_bytes <= 256 * 1024)

    kernel = functools.partial(_cg_kernel, max_iter=max_iter, tol=tol, unroll=unroll)

    # NOTE: for large B one would process G>1 rows n per grid step to hide the
    # per-iteration reduce->scalar latency; at B=2 that would shrink the grid to
    # length 1 and idle one v7x TensorCore, so G=1 here.
    out_r, out_i = pl.pallas_call(
        kernel,
        grid=(B,),
        in_specs=[
            pl.BlockSpec((B, Np), lambda n: (0, 0)),       # rhs real (resident)
            pl.BlockSpec((B, Np), lambda n: (0, 0)),       # rhs imag (resident)
            pl.BlockSpec((B, Np), lambda n: (0, 0)),       # Mdiag    (resident)
        ],
        out_specs=[
            pl.BlockSpec((1, 1, Np), lambda n: (n, 0, 0)),  # out real, row n only
            pl.BlockSpec((1, 1, Np), lambda n: (n, 0, 0)),  # out imag, row n only
        ],
        out_shape=[
            jax.ShapeDtypeStruct((B, 1, Np), f32),
            jax.ShapeDtypeStruct((B, 1, Np), f32),
        ],
        compiler_params=pltpu.CompilerParams(
            dimension_semantics=("parallel",),              # write-disjoint grid steps
            vmem_limit_bytes=_pick_vmem_limit(plane_bytes),
        ),
    )(rhs_r, rhs_i, mdiag)

    out = (out_r + 1j * out_i).astype(jnp.complex64).reshape(B, Np)
    return out[:, :N].reshape(B, H, W)


# ----------------------- pure-JAX reference (for checking) ------------------
def _A(p, csm, mask, mu):
    return mask * (csm * p[:, None, :, :])


def _AH(k, csm, mask, mu):
    return jnp.sum(jnp.conj(csm) * (mask * k), axis=1)


def cg_class_reference(lambdaa, x, y, csm, mask, mu, max_iter=MAX_ITER, tol=TOL):
    lam = jnp.complex64(lambdaa)
    outs = []
    for n in range(x.shape[0]):
        xs, ys, cs = x[n:], y[n:], csm[n:]

        def M(p, cs=cs):
            return _AH(_A(p, cs, mask, mu), cs, mask, mu) + lam * p

        rhs = _AH(ys, cs, mask, mu) + lam * xs
        xk = jnp.zeros_like(rhs)
        r = rhs
        p = rhs
        rtr = jnp.sum(jnp.abs(r) ** 2)
        it = 0
        while float(rtr) > tol and it < max_iter:
            it += 1
            q = M(p)
            alpha = rtr / jnp.sum(jnp.conj(p) * q)
            xk = xk + alpha * p
            r = r - alpha * q
            rtr_new = jnp.sum(jnp.abs(r) ** 2)
            beta = rtr_new / rtr
            p = r + beta * p
            rtr = rtr_new
        outs.append(xk[0])
    return jnp.stack(outs)


if __name__ == "__main__":
    B, C, H, W = 2, 4, 16, 16
    key = jax.random.PRNGKey(0)
    k1, k2, k3, k4, k5, k6, k7 = jax.random.split(key, 7)

    def cplx(kr, ki, shape):
        return (jax.random.normal(kr, shape, jnp.float32)
                + 1j * jax.random.normal(ki, shape, jnp.float32)).astype(jnp.complex64)

    x = cplx(k1, k2, (B, H, W))             # current image estimate
    y = cplx(k3, k4, (B, C, H, W))          # per-coil measured data
    csm = cplx(k5, k6, (B, C, H, W))        # coil sensitivity maps (constant)
    mask = (jax.random.uniform(k7, (H, W)) > 0.3).astype(jnp.float32)
    lambdaa = jnp.float32(0.05)
    mu = jnp.float32(0.1)

    out = jax.block_until_ready(cg_class_forward(lambdaa, x, y, csm, mask, mu))
    ref = cg_class_reference(lambdaa, x, y, csm, mask, mu)

    assert out.shape == ref.shape == (B, H, W)
    err = float(jnp.max(jnp.abs(out - ref)))
    scale = float(jnp.max(jnp.abs(ref))) + 1e-8
    assert err / scale < 5e-3, f"mismatch: max_err={err}, scale={scale}"
    print("KERNEL_OK")
</pallas_src>

<mosaic_0001>
module attributes {stable_mosaic.version = 11 : i64} {
  func.func @_cg_kernel(%arg0: i32, %arg1: memref<2x256xf32, #tpu.memory_space<vmem>>, %arg2: memref<2x256xf32, #tpu.memory_space<vmem>>, %arg3: memref<2x256xf32, #tpu.memory_space<vmem>>, %arg4: memref<1x1x256xf32, #tpu.memory_space<vmem>>, %arg5: memref<1x1x256xf32, #tpu.memory_space<vmem>>) attributes {dimension_semantics = [#tpu.dimension_semantics<parallel>], iteration_bounds = array<i64: 2>, scalar_prefetch = 0 : i64, scratch_operands = 0 : i64, tpu.core_type = #tpu.core_type<tc>, window_params = [{pipeline_mode = #tpu.pipeline_mode<synchronous>, transform_indices = @transform_0, window_bounds = array<i64: 2, 256>}, {pipeline_mode = #tpu.pipeline_mode<synchronous>, transform_indices = @transform_1, window_bounds = array<i64: 2, 256>}, {pipeline_mode = #tpu.pipeline_mode<synchronous>, transform_indices = @transform_2, window_bounds = array<i64: 2, 256>}, {transform_indices = @transform_3, window_bounds = array<i64: 1, 1, 256>}, {transform_indices = @transform_4, window_bounds = array<i64: 1, 1, 256>}]} {
    %0 = tpu.iota {dimensions = array<i32: 0>} : vector<2x256xi32>
    %1 = vector.broadcast %arg0 : i32 to vector<2x256xi32>
    %2 = arith.cmpi sge, %0, %1 : vector<2x256xi32>
    %3 = arith.extui %2 : vector<2x256xi1> to vector<2x256xi32>
    %4 = arith.sitofp %3 : vector<2x256xi32> to vector<2x256xf32>
    %c0 = arith.constant 0 : index
    %c0_0 = arith.constant 0 : index
    %5 = vector.load %arg3[%c0, %c0_0] : memref<2x256xf32, #tpu.memory_space<vmem>>, vector<2x256xf32>
    %c0_1 = arith.constant 0 : index
    %c0_2 = arith.constant 0 : index
    %6 = vector.load %arg1[%c0_1, %c0_2] : memref<2x256xf32, #tpu.memory_space<vmem>>, vector<2x256xf32>
    %7 = arith.mulf %6, %4 : vector<2x256xf32>
    %c0_3 = arith.constant 0 : index
    %c0_4 = arith.constant 0 : index
    %8 = vector.load %arg2[%c0_3, %c0_4] : memref<2x256xf32, #tpu.memory_space<vmem>>, vector<2x256xf32>
    %9 = arith.mulf %8, %4 : vector<2x256xf32>
    %10 = arith.mulf %7, %7 : vector<2x256xf32>
    %11 = arith.mulf %9, %9 : vector<2x256xf32>
    %12 = arith.addf %10, %11 : vector<2x256xf32>
    %13 = vector.shape_cast %12 : vector<2x256xf32> to vector<1x2x256xf32>
    %cst = arith.constant dense<0.000000e+00> : vector<1xf32>
    %14 = vector.multi_reduction <add>, %13, %cst [1, 2] : vector<1x2x256xf32> to vector<1xf32>
    %15 = vector.shape_cast %14 : vector<1xf32> to vector<1x1x1xf32>
    %16 = vector.extract %15[0, 0, 0] : f32 from vector<1x1x1xf32>
    %17 = arith.index_cast %arg0 : i32 to index
    %c0_5 = arith.constant 0 : index
    %18 = vector.load %arg3[%17, %c0_5] : memref<2x256xf32, #tpu.memory_space<vmem>>, vector<1x256xf32>
    %19 = arith.index_cast %arg0 : i32 to index
    %c0_6 = arith.constant 0 : index
    %20 = vector.load %arg1[%19, %c0_6] : memref<2x256xf32, #tpu.memory_space<vmem>>, vector<1x256xf32>
    %21 = arith.index_cast %arg0 : i32 to index
    %c0_7 = arith.constant 0 : index
    %22 = vector.load %arg2[%21, %c0_7] : memref<2x256xf32, #tpu.memory_space<vmem>>, vector<1x256xf32>
    %cst_8 = arith.constant 0.000000e+00 : f32
    %23 = vector.broadcast %cst_8 : f32 to vector<1x256xf32>
    %c0_i32 = arith.constant 0 : i32
    %cst_9 = arith.constant 1.000000e-10 : f32
    %24 = arith.cmpf ogt, %16, %cst_9 : f32
    %25 = arith.extui %24 : i1 to i32
    %26 = arith.sitofp %25 : i32 to f32
    %27 = arith.mulf %5, %7 : vector<2x256xf32>
    %28 = arith.mulf %5, %9 : vector<2x256xf32>
    %29 = arith.mulf %7, %27 : vector<2x256xf32>
    %30 = arith.mulf %9, %28 : vector<2x256xf32>
    %31 = arith.addf %29, %30 : vector<2x256xf32>
    %32 = vector.shape_cast %31 : vector<2x256xf32> to vector<1x2x256xf32>
    %cst_10 = arith.constant dense<0.000000e+00> : vector<1xf32>
    %33 = vector.multi_reduction <add>, %32, %cst_10 [1, 2] : vector<1x2x256xf32> to vector<1xf32>
    %34 = vector.shape_cast %33 : vector<1xf32> to vector<1x1x1xf32>
    %35 = vector.extract %34[0, 0, 0] : f32 from vector<1x1x1xf32>
    %36 = arith.mulf %7, %27 : vector<2x256xf32>
    %37 = arith.mulf %9, %28 : vector<2x256xf32>
    %38 = arith.addf %36, %37 : vector<2x256xf32>
    %39 = vector.shape_cast %38 : vector<2x256xf32> to vector<1x2x256xf32>
    %cst_11 = arith.constant dense<0.000000e+00> : vector<1xf32>
    %40 = vector.multi_reduction <add>, %39, %cst_11 [1, 2] : vector<1x2x256xf32> to vector<1xf32>
    %41 = vector.shape_cast %40 : vector<1xf32> to vector<1x1x1xf32>
    %42 = vector.extract %41[0, 0, 0] : f32 from vector<1x1x1xf32>
    %43 = arith.mulf %27, %27 : vector<2x256xf32>
    %44 = arith.mulf %28, %28 : vector<2x256xf32>
    %45 = arith.addf %43, %44 : vector<2x256xf32>
    %46 = vector.shape_cast %45 : vector<2x256xf32> to vector<1x2x256xf32>
    %cst_12 = arith.constant dense<0.000000e+00> : vector<1xf32>
    %47 = vector.multi_reduction <add>, %46, %cst_12 [1, 2] : vector<1x2x256xf32> to vector<1xf32>
    %48 = vector.shape_cast %47 : vector<1xf32> to vector<1x1x1xf32>
    %49 = vector.extract %48[0, 0, 0] : f32 from vector<1x1x1xf32>
    %cst_13 = arith.constant 0.000000e+00 : f32
    %50 = arith.cmpf one, %35, %cst_13 : f32
    %cst_14 = arith.constant 1.000000e+00 : f32
    %51 = arith.select %50, %35, %cst_14 : f32
    %52 = arith.divf %16, %51 : f32
    %cst_15 = arith.constant 0.000000e+00 : f32
    %53 = arith.select %24, %52, %cst_15 : f32
    %54 = vector.broadcast %53 : f32 to vector<2x256xf32>
    %55 = arith.mulf %54, %27 : vector<2x256xf32>
    %56 = arith.subf %7, %55 : vector<2x256xf32>
    %57 = vector.broadcast %53 : f32 to vector<2x256xf32>
    %58 = arith.mulf %57, %28 : vector<2x256xf32>
    %59 = arith.subf %9, %58 : vector<2x256xf32>
    %cst_16 = arith.constant 2.000000e+00 : f32
    %60 = arith.mulf %cst_16, %53 : f32
    %61 = arith.mulf %60, %42 : f32
    %62 = arith.subf %16, %61 : f32
    %63 = arith.mulf %53, %53 : f32
    %64 = arith.mulf %63, %49 : f32
    %65 = arith.addf %62, %64 : f32
    %cst_17 = arith.constant 0.000000e+00 : f32
    %66 = arith.cmpf one, %16, %cst_17 : f32
    %cst_18 = arith.constant 1.000000e+00 : f32
    %67 = arith.select %66, %16, %cst_18 : f32
    %68 = arith.divf %65, %67 : f32
    %cst_19 = arith.constant 1.000000e+00 : f32
    %69 = arith.select %24, %68, %cst_19 : f32
    %70 = vector.broadcast %26 : f32 to vector<2x256xf32>
    %71 = arith.mulf %70, %56 : vector<2x256xf32>
    %72 = vector.broadcast %69 : f32 to vector<2x256xf32>
    %73 = arith.mulf %72, %7 : vector<2x256xf32>
    %74 = arith.addf %71, %73 : vector<2x256xf32>
    %75 = vector.broadcast %26 : f32 to vector<2x256xf32>
    %76 = arith.mulf %75, %59 : vector<2x256xf32>
    %77 = vector.broadcast %69 : f32 to vector<2x256xf32>
    %78 = arith.mulf %77, %9 : vector<2x256xf32>
    %79 = arith.addf %76, %78 : vector<2x256xf32>
    %80 = arith.mulf %18, %20 : vector<1x256xf32>
    %81 = arith.mulf %18, %22 : vector<1x256xf32>
    %82 = vector.broadcast %53 : f32 to vector<1x256xf32>
    %83 = arith.mulf %82, %20 : vector<1x256xf32>
    %84 = arith.addf %23, %83 : vector<1x256xf32>
    %85 = vector.broadcast %53 : f32 to vector<1x256xf32>
    %86 = arith.mulf %85, %22 : vector<1x256xf32>
    %87 = arith.addf %23, %86 : vector<1x256xf32>
    %88 = vector.broadcast %53 : f32 to vector<1x256xf32>
    %89 = arith.mulf %88, %80 : vector<1x256xf32>
    %90 = arith.subf %20, %89 : vector<1x256xf32>
    %91 = vector.broadcast %53 : f32 to vector<1x256xf32>
    %92 = arith.mulf %91, %81 : vector<1x256xf32>
    %93 = arith.subf %22, %92 : vector<1x256xf32>
    %94 = vector.broadcast %26 : f32 to vector<1x256xf32>
    %95 = arith.mulf %94, %90 : vector<1x256xf32>
    %96 = vector.broadcast %69 : f32 to vector<1x256xf32>
    %97 = arith.mulf %96, %20 : vector<1x256xf32>
    %98 = arith.addf %95, %97 : vector<1x256xf32>
    %99 = vector.broadcast %26 : f32 to vector<1x256xf32>
    %100 = arith.mulf %99, %93 : vector<1x256xf32>
    %101 = vector.broadcast %69 : f32 to vector<1x256xf32>
    %102 = arith.mulf %101, %22 : vector<1x256xf32>
    %103 = arith.addf %100, %102 : vector<1x256xf32>
    %c1_i32 = arith.constant 1 : i32
    %cst_20 = arith.constant 1.000000e-10 : f32
    %104 = arith.cmpf ogt, %65, %cst_20 : f32
    %105 = arith.extui %104 : i1 to i32
    %106 = arith.sitofp %105 : i32 to f32
    %107 = arith.mulf %5, %74 : vector<2x256xf32>
    %108 = arith.mulf %5, %79 : vector<2x256xf32>
    %109 = arith.mulf %74, %107 : vector<2x256xf32>
    %110 = arith.mulf %79, %108 : vector<2x256xf32>
    %111 = arith.addf %109, %110 : vector<2x256xf32>
    %112 = vector.shape_cast %111 : vector<2x256xf32> to vector<1x2x256xf32>
    %cst_21 = arith.constant dense<0.000000e+00> : vector<1xf32>
    %113 = vector.multi_reduction <add>, %112, %cst_21 [1, 2] : vector<1x2x256xf32> to vector<1xf32>
    %114 = vector.shape_cast %113 : vector<1xf32> to vector<1x1x1xf32>
    %115 = vector.extract %114[0, 0, 0] : f32 from vector<1x1x1xf32>
    %116 = arith.mulf %56, %107 : vector<2x256xf32>
    %117 = arith.mulf %59, %108 : vector<2x256xf32>
    %118 = arith.addf %116, %117 : vector<2x256xf32>
    %119 = vector.shape_cast %118 : vector<2x256xf32> to vector<1x2x256xf32>
    %cst_22 = arith.constant dense<0.000000e+00> : vector<1xf32>
    %120 = vector.multi_reduction <add>, %119, %cst_22 [1, 2] : vector<1x2x256xf32> to vector<1xf32>
    %121 = vector.shape_cast %120 : vector<1xf32> to vector<1x1x1xf32>
    %122 = vector.extract %121[0, 0, 0] : f32 from vector<1x1x1xf32>
    %123 = arith.mulf %107, %107 : vector<2x256xf32>
    %124 = arith.mulf %108, %108 : vector<2x256xf32>
    %125 = arith.addf %123, %124 : vector<2x256xf32>
    %126 = vector.shape_cast %125 : vector<2x256xf32> to vector<1x2x256xf32>
    %cst_23 = arith.constant dense<0.000000e+00> : vector<1xf32>
    %127 = vector.multi_reduction <add>, %126, %cst_23 [1, 2] : vector<1x2x256xf32> to vector<1xf32>
    %128 = vector.shape_cast %127 : vector<1xf32> to vector<1x1x1xf32>
    %129 = vector.extract %128[0, 0, 0] : f32 from vector<1x1x1xf32>
    %cst_24 = arith.constant 0.000000e+00 : f32
    %130 = arith.cmpf one, %115, %cst_24 : f32
    %cst_25 = arith.constant 1.000000e+00 : f32
    %131 = arith.select %130, %115, %cst_25 : f32
    %132 = arith.divf %65, %131 : f32
    %cst_26 = arith.constant 0.000000e+00 : f32
    %133 = arith.select %104, %132, %cst_26 : f32
    %134 = vector.broadcast %133 : f32 to vector<2x256xf32>
    %135 = arith.mulf %134, %107 : vector<2x256xf32>
    %136 = arith.subf %56, %135 : vector<2x256xf32>
    %137 = vector.broadcast %133 : f32 to vector<2x256xf32>
    %138 = arith.mulf %137, %108 : vector<2x256xf32>
    %139 = arith.subf %59, %138 : vector<2x256xf32>
    %cst_27 = arith.constant 2.000000e+00 : f32
    %140 = arith.mulf %cst_27, %133 : f32
    %141 = arith.mulf %140, %122 : f32
    %142 = arith.subf %65, %141 : f32
    %143 = arith.mulf %133, %133 : f32
    %144 = arith.mulf %143, %129 : f32
    %145 = arith.addf %142, %144 : f32
    %cst_28 = arith.constant 0.000000e+00 : f32
    %146 = arith.cmpf one, %65, %cst_28 : f32
    %cst_29 = arith.constant 1.000000e+00 : f32
    %147 = arith.select %146, %65, %cst_29 : f32
    %148 = arith.divf %145, %147 : f32
    %cst_30 = arith.constant 1.000000e+00 : f32
    %149 = arith.select %104, %148, %cst_30 : f32
    %150 = vector.broadcast %106 : f32 to vector<2x256xf32>
    %151 = arith.mulf %150, %136 : vector<2x256xf32>
    %152 = vector.broadcast %149 : f32 to vector<2x256xf32>
    %153 = arith.mulf %152, %74 : vector<2x256xf32>
    %154 = arith.addf %151, %153 : vector<2x256xf32>
    %155 = vector.broadcast %106 : f32 to vector<2x256xf32>
    %156 = arith.mulf %155, %139 : vector<2x256xf32>
    %157 = vector.broadcast %149 : f32 to vector<2x256xf32>
    %158 = arith.mulf %157, %79 : vector<2x256xf32>
    %159 = arith.addf %156, %158 : vector<2x256xf32>
    %160 = arith.mulf %18, %98 : vector<1x256xf32>
    %161 = arith.mulf %18, %103 : vector<1x256xf32>
    %162 = vector.broadcast %133 : f32 to vector<1x256xf32>
    %163 = arith.mulf %162, %98 : vector<1x256xf32>
    %164 = arith.addf %84, %163 : vector<1x256xf32>
    %165 = vector.broadcast %133 : f32 to vector<1x256xf32>
    %166 = arith.mulf %165, %103 : vector<1x256xf32>
    %167 = arith.addf %87, %166 : vector<1x256xf32>
    %168 = vector.broadcast %133 : f32 to vector<1x256xf32>
    %169 = arith.mulf %168, %160 : vector<1x256xf32>
    %170 = arith.subf %90, %169 : vector<1x256xf32>
    %171 = vector.broadcast %133 : f32 to vector<1x256xf32>
    %172 = arith.mulf %171, %161 : vector<1x256xf32>
    %173 = arith.subf %93, %172 : vector<1x256xf32>
    %174 = vector.broadcast %106 : f32 to vector<1x256xf32>
    %175 = arith.mulf %174, %170 : vector<1x256xf32>
    %176 = vector.broadcast %149 : f32 to vector<1x256xf32>
    %177 = arith.mulf %176, %98 : vector<1x256xf32>
    %178 = arith.addf %175, %177 : vector<1x256xf32>
    %179 = vector.broadcast %106 : f32 to vector<1x256xf32>
    %180 = arith.mulf %179, %173 : vector<1x256xf32>
    %181 = vector.broadcast %149 : f32 to vector<1x256xf32>
    %182 = arith.mulf %181, %103 : vector<1x256xf32>
    %183 = arith.addf %180, %182 : vector<1x256xf32>
    %c2_i32 = arith.constant 2 : i32
    %cst_31 = arith.constant 1.000000e-10 : f32
    %184 = arith.cmpf ogt, %145, %cst_31 : f32
    %185 = arith.extui %184 : i1 to i32
    %186 = arith.sitofp %185 : i32 to f32
    %187 = arith.mulf %5, %154 : vector<2x256xf32>
    %188 = arith.mulf %5, %159 : vector<2x256xf32>
    %189 = arith.mulf %154, %187 : vector<2x256xf32>
    %190 = arith.mulf %159, %188 : vector<2x256xf32>
    %191 = arith.addf %189, %190 : vector<2x256xf32>
    %192 = vector.shape_cast %191 : vector<2x256xf32> to vector<1x2x256xf32>
    %cst_32 = arith.constant dense<0.000000e+00> : vector<1xf32>
    %193 = vector.multi_reduction <add>, %192, %cst_32 [1, 2] : vector<1x2x256xf32> to vector<1xf32>
    %194 = vector.shape_cast %193 : vector<1xf32> to vector<1x1x1xf32>
    %195 = vector.extract %194[0, 0, 0] : f32 from vector<1x1x1xf32>
    %196 = arith.mulf %136, %187 : vector<2x256xf32>
    %197 = arith.mulf %139, %188 : vector<2x256xf32>
    %198 = arith.addf %196, %197 : vector<2x256xf32>
    %199 = vector.shape_cast %198 : vector<2x256xf32> to vector<1x2x256xf32>
    %cst_33 = arith.constant dense<0.000000e+00> : vector<1xf32>
    %200 = vector.multi_reduction <add>, %199, %cst_33 [1, 2] : vector<1x2x256xf32> to vector<1xf32>
    %201 = vector.shape_cast %200 : vector<1xf32> to vector<1x1x1xf32>
    %202 = vector.extract %201[0, 0, 0] : f32 from vector<1x1x1xf32>
    %203 = arith.mulf %187, %187 : vector<2x256xf32>
    %204 = arith.mulf %188, %188 : vector<2x256xf32>
    %205 = arith.addf %203, %204 : vector<2x256xf32>
    %206 = vector.shape_cast %205 : vector<2x256xf32> to vector<1x2x256xf32>
    %cst_34 = arith.constant dense<0.000000e+00> : vector<1xf32>
    %207 = vector.multi_reduction <add>, %206, %cst_34 [1, 2] : vector<1x2x256xf32> to vector<1xf32>
    %208 = vector.shape_cast %207 : vector<1xf32> to vector<1x1x1xf32>
    %209 = vector.extract %208[0, 0, 0] : f32 from vector<1x1x1xf32>
    %cst_35 = arith.constant 0.000000e+00 : f32
    %210 = arith.cmpf one, %195, %cst_35 : f32
    %cst_36 = arith.constant 1.000000e+00 : f32
    %211 = arith.select %210, %195, %cst_36 : f32
    %212 = arith.divf %145, %211 : f32
    %cst_37 = arith.constant 0.000000e+00 : f32
    %213 = arith.select %184, %212, %cst_37 : f32
    %214 = vector.broadcast %213 : f32 to vector<2x256xf32>
    %215 = arith.mulf %214, %187 : vector<2x256xf32>
    %216 = arith.subf %136, %215 : vector<2x256xf32>
    %217 = vector.broadcast %213 : f32 to vector<2x256xf32>
    %218 = arith.mulf %217, %188 : vector<2x256xf32>
    %219 = arith.subf %139, %218 : vector<2x256xf32>
    %cst_38 = arith.constant 2.000000e+00 : f32
    %220 = arith.mulf %cst_38, %213 : f32
    %221 = arith.mulf %220, %202 : f32
    %222 = arith.subf %145, %221 : f32
    %223 = arith.mulf %213, %213 : f32
    %224 = arith.mulf %223, %209 : f32
    %225 = arith.addf %222, %224 : f32
    %cst_39 = arith.constant 0.000000e+00 : f32
    %226 = arith.cmpf one, %145, %cst_39 : f32
    %cst_40 = arith.constant 1.000000e+00 : f32
    %227 = arith.select %226, %145, %cst_40 : f32
    %228 = arith.divf %225, %227 : f32
    %cst_41 = arith.constant 1.000000e+00 : f32
    %229 = arith.select %184, %228, %cst_41 : f32
    %230 = vector.broadcast %186 : f32 to vector<2x256xf32>
    %231 = arith.mulf %230, %216 : vector<2x256xf32>
    %232 = vector.broadcast %229 : f32 to vector<2x256xf32>
    %233 = arith.mulf %232, %154 : vector<2x256xf32>
    %234 = arith.addf %231, %233 : vector<2x256xf32>
    %235 = vector.broadcast %186 : f32 to vector<2x256xf32>
    %236 = arith.mulf %235, %219 : vector<2x256xf32>
    %237 = vector.broadcast %229 : f32 to vector<2x256xf32>
    %238 = arith.mulf %237, %159 : vector<2x256xf32>
    %239 = arith.addf %236, %238 : vector<2x256xf32>
    %240 = arith.mulf %18, %178 : vector<1x256xf32>
    %241 = arith.mulf %18, %183 : vector<1x256xf32>
    %242 = vector.broadcast %213 : f32 to vector<1x256xf32>
    %243 = arith.mulf %242, %178 : vector<1x256xf32>
    %244 = arith.addf %164, %243 : vector<1x256xf32>
    %245 = vector.broadcast %213 : f32 to vector<1x256xf32>
    %246 = arith.mulf %245, %183 : vector<1x256xf32>
    %247 = arith.addf %167, %246 : vector<1x256xf32>
    %248 = vector.broadcast %213 : f32 to vector<1x256xf32>
    %249 = arith.mulf %248, %240 : vector<1x256xf32>
    %250 = arith.subf %170, %249 : vector<1x256xf32>
    %251 = vector.broadcast %213 : f32 to vector<1x256xf32>
    %252 = arith.mulf %251, %241 : vector<1x256xf32>
    %253 = arith.subf %173, %252 : vector<1x256xf32>
    %254 = vector.broadcast %186 : f32 to vector<1x256xf32>
    %255 = arith.mulf %254, %250 : vector<1x256xf32>
    %256 = vector.broadcast %229 : f32 to vector<1x256xf32>
    %257 = arith.mulf %256, %178 : vector<1x256xf32>
    %258 = arith.addf %255, %257 : vector<1x256xf32>
    %259 = vector.broadcast %186 : f32 to vector<1x256xf32>
    %260 = arith.mulf %259, %253 : vector<1x256xf32>
    %261 = vector.broadcast %229 : f32 to vector<1x256xf32>
    %262 = arith.mulf %261, %183 : vector<1x256xf32>
    %263 = arith.addf %260, %262 : vector<1x256xf32>
    %c3_i32 = arith.constant 3 : i32
    %cst_42 = arith.constant 1.000000e-10 : f32
    %264 = arith.cmpf ogt, %225, %cst_42 : f32
    %265 = arith.extui %264 : i1 to i32
    %266 = arith.sitofp %265 : i32 to f32
    %267 = arith.mulf %5, %234 : vector<2x256xf32>
    %268 = arith.mulf %5, %239 : vector<2x256xf32>
    %269 = arith.mulf %234, %267 : vector<2x256xf32>
    %270 = arith.mulf %239, %268 : vector<2x256xf32>
    %271 = arith.addf %269, %270 : vector<2x256xf32>
    %272 = vector.shape_cast %271 : vector<2x256xf32> to vector<1x2x256xf32>
    %cst_43 = arith.constant dense<0.000000e+00> : vector<1xf32>
    %273 = vector.multi_reduction <add>, %272, %cst_43 [1, 2] : vector<1x2x256xf32> to vector<1xf32>
    %274 = vector.shape_cast %273 : vector<1xf32> to vector<1x1x1xf32>
    %275 = vector.extract %274[0, 0, 0] : f32 from vector<1x1x1xf32>
    %276 = arith.mulf %216, %267 : vector<2x256xf32>
    %277 = arith.mulf %219, %268 : vector<2x256xf32>
    %278 = arith.addf %276, %277 : vector<2x256xf32>
    %279 = vector.shape_cast %278 : vector<2x256xf32> to vector<1x2x256xf32>
    %cst_44 = arith.constant dense<0.000000e+00> : vector<1xf32>
    %280 = vector.multi_reduction <add>, %279, %cst_44 [1, 2] : vector<1x2x256xf32> to vector<1xf32>
    %281 = vector.shape_cast %280 : vector<1xf32> to vector<1x1x1xf32>
    %282 = vector.extract %281[0, 0, 0] : f32 from vector<1x1x1xf32>
    %283 = arith.mulf %267, %267 : vector<2x256xf32>
    %284 = arith.mulf %268, %268 : vector<2x256xf32>
    %285 = arith.addf %283, %284 : vector<2x256xf32>
    %286 = vector.shape_cast %285 : vector<2x256xf32> to vector<1x2x256xf32>
    %cst_45 = arith.constant dense<0.000000e+00> : vector<1xf32>
    %287 = vector.multi_reduction <add>, %286, %cst_45 [1, 2] : vector<1x2x256xf32> to vector<1xf32>
    %288 = vector.shape_cast %287 : vector<1xf32> to vector<1x1x1xf32>
    %289 = vector.extract %288[0, 0, 0] : f32 from vector<1x1x1xf32>
    %cst_46 = arith.constant 0.000000e+00 : f32
    %290 = arith.cmpf one, %275, %cst_46 : f32
    %cst_47 = arith.constant 1.000000e+00 : f32
    %291 = arith.select %290, %275, %cst_47 : f32
    %292 = arith.divf %225, %291 : f32
    %cst_48 = arith.constant 0.000000e+00 : f32
    %293 = arith.select %264, %292, %cst_48 : f32
    %294 = vector.broadcast %293 : f32 to vector<2x256xf32>
    %295 = arith.mulf %294, %267 : vector<2x256xf32>
    %296 = arith.subf %216, %295 : vector<2x256xf32>
    %297 = vector.broadcast %293 : f32 to vector<2x256xf32>
    %298 = arith.mulf %297, %268 : vector<2x256xf32>
    %299 = arith.subf %219, %298 : vector<2x256xf32>
    %cst_49 = arith.constant 2.000000e+00 : f32
    %300 = arith.mulf %cst_49, %293 : f32
    %301 = arith.mulf %300, %282 : f32
    %302 = arith.subf %225, %301 : f32
    %303 = arith.mulf %293, %293 : f32
    %304 = arith.mulf %303, %289 : f32
    %305 = arith.addf %302, %304 : f32
    %cst_50 = arith.constant 0.000000e+00 : f32
    %306 = arith.cmpf one, %225, %cst_50 : f32
    %cst_51 = arith.constant 1.000000e+00 : f32
    %307 = arith.select %306, %225, %cst_51 : f32
    %308 = arith.divf %305, %307 : f32
    %cst_52 = arith.constant 1.000000e+00 : f32
    %309 = arith.select %264, %308, %cst_52 : f32
    %310 = vector.broadcast %266 : f32 to vector<2x256xf32>
    %311 = arith.mulf %310, %296 : vector<2x256xf32>
    %312 = vector.broadcast %309 : f32 to vector<2x256xf32>
    %313 = arith.mulf %312, %234 : vector<2x256xf32>
    %314 = arith.addf %311, %313 : vector<2x256xf32>
    %315 = vector.broadcast %266 : f32 to vector<2x256xf32>
    %316 = arith.mulf %315, %299 : vector<2x256xf32>
    %317 = vector.broadcast %309 : f32 to vector<2x256xf32>
    %318 = arith.mulf %317, %239 : vector<2x256xf32>
    %319 = arith.addf %316, %318 : vector<2x256xf32>
    %320 = arith.mulf %18, %258 : vector<1x256xf32>
    %321 = arith.mulf %18, %263 : vector<1x256xf32>
    %322 = vector.broadcast %293 : f32 to vector<1x256xf32>
    %323 = arith.mulf %322, %258 : vector<1x256xf32>
    %324 = arith.addf %244, %323 : vector<1x256xf32>
    %325 = vector.broadcast %293 : f32 to vector<1x256xf32>
    %326 = arith.mulf %325, %263 : vector<1x256xf32>
    %327 = arith.addf %247, %326 : vector<1x256xf32>
    %328 = vector.broadcast %293 : f32 to vector<1x256xf32>
    %329 = arith.mulf %328, %320 : vector<1x256xf32>
    %330 = arith.subf %250, %329 : vector<1x256xf32>
    %331 = vector.broadcast %293 : f32 to vector<1x256xf32>
    %332 = arith.mulf %331, %321 : vector<1x256xf32>
    %333 = arith.subf %253, %332 : vector<1x256xf32>
    %334 = vector.broadcast %266 : f32 to vector<1x256xf32>
    %335 = arith.mulf %334, %330 : vector<1x256xf32>
    %336 = vector.broadcast %309 : f32 to vector<1x256xf32>
    %337 = arith.mulf %336, %258 : vector<1x256xf32>
    %338 = arith.addf %335, %337 : vector<1x256xf32>
    %339 = vector.broadcast %266 : f32 to vector<1x256xf32>
    %340 = arith.mulf %339, %333 : vector<1x256xf32>
    %341 = vector.broadcast %309 : f32 to vector<1x256xf32>
    %342 = arith.mulf %341, %263 : vector<1x256xf32>
    %343 = arith.addf %340, %342 : vector<1x256xf32>
    %c4_i32 = arith.constant 4 : i32
    %cst_53 = arith.constant 1.000000e-10 : f32
    %344 = arith.cmpf ogt, %305, %cst_53 : f32
    %345 = arith.extui %344 : i1 to i32
    %346 = arith.sitofp %345 : i32 to f32
    %347 = arith.mulf %5, %314 : vector<2x256xf32>
    %348 = arith.mulf %5, %319 : vector<2x256xf32>
    %349 = arith.mulf %314, %347 : vector<2x256xf32>
    %350 = arith.mulf %319, %348 : vector<2x256xf32>
    %351 = arith.addf %349, %350 : vector<2x256xf32>
    %352 = vector.shape_cast %351 : vector<2x256xf32> to vector<1x2x256xf32>
    %cst_54 = arith.constant dense<0.000000e+00> : vector<1xf32>
    %353 = vector.multi_reduction <add>, %352, %cst_54 [1, 2] : vector<1x2x256xf32> to vector<1xf32>
    %354 = vector.shape_cast %353 : vector<1xf32> to vector<1x1x1xf32>
    %355 = vector.extract %354[0, 0, 0] : f32 from vector<1x1x1xf32>
    %356 = arith.mulf %296, %347 : vector<2x256xf32>
    %357 = arith.mulf %299, %348 : vector<2x256xf32>
    %358 = arith.addf %356, %357 : vector<2x256xf32>
    %359 = vector.shape_cast %358 : vector<2x256xf32> to vector<1x2x256xf32>
    %cst_55 = arith.constant dense<0.000000e+00> : vector<1xf32>
    %360 = vector.multi_reduction <add>, %359, %cst_55 [1, 2] : vector<1x2x256xf32> to vector<1xf32>
    %361 = vector.shape_cast %360 : vector<1xf32> to vector<1x1x1xf32>
    %362 = vector.extract %361[0, 0, 0] : f32 from vector<1x1x1xf32>
    %363 = arith.mulf %347, %347 : vector<2x256xf32>
    %364 = arith.mulf %348, %348 : vector<2x256xf32>
    %365 = arith.addf %363, %364 : vector<2x256xf32>
    %366 = vector.shape_cast %365 : vector<2x256xf32> to vector<1x2x256xf32>
    %cst_56 = arith.constant dense<0.000000e+00> : vector<1xf32>
    %367 = vector.multi_reduction <add>, %366, %cst_56 [1, 2] : vector<1x2x256xf32> to vector<1xf32>
    %368 = vector.shape_cast %367 : vector<1xf32> to vector<1x1x1xf32>
    %369 = vector.extract %368[0, 0, 0] : f32 from vector<1x1x1xf32>
    %cst_57 = arith.constant 0.000000e+00 : f32
    %370 = arith.cmpf one, %355, %cst_57 : f32
    %cst_58 = arith.constant 1.000000e+00 : f32
    %371 = arith.select %370, %355, %cst_58 : f32
    %372 = arith.divf %305, %371 : f32
    %cst_59 = arith.constant 0.000000e+00 : f32
    %373 = arith.select %344, %372, %cst_59 : f32
    %374 = vector.broadcast %373 : f32 to vector<2x256xf32>
    %375 = arith.mulf %374, %347 : vector<2x256xf32>
    %376 = arith.subf %296, %375 : vector<2x256xf32>
    %377 = vector.broadcast %373 : f32 to vector<2x256xf32>
    %378 = arith.mulf %377, %348 : vector<2x256xf32>
    %379 = arith.subf %299, %378 : vector<2x256xf32>
    %cst_60 = arith.constant 2.000000e+00 : f32
    %380 = arith.mulf %cst_60, %373 : f32
    %381 = arith.mulf %380, %362 : f32
    %382 = arith.subf %305, %381 : f32
    %383 = arith.mulf %373, %373 : f32
    %384 = arith.mulf %383, %369 : f32
    %385 = arith.addf %382, %384 : f32
    %cst_61 = arith.constant 0.000000e+00 : f32
    %386 = arith.cmpf one, %305, %cst_61 : f32
    %cst_62 = arith.constant 1.000000e+00 : f32
    %387 = arith.select %386, %305, %cst_62 : f32
    %388 = arith.divf %385, %387 : f32
    %cst_63 = arith.constant 1.000000e+00 : f32
    %389 = arith.select %344, %388, %cst_63 : f32
    %390 = vector.broadcast %346 : f32 to vector<2x256xf32>
    %391 = arith.mulf %390, %376 : vector<2x256xf32>
    %392 = vector.broadcast %389 : f32 to vector<2x256xf32>
    %393 = arith.mulf %392, %314 : vector<2x256xf32>
    %394 = arith.addf %391, %393 : vector<2x256xf32>
    %395 = vector.broadcast %346 : f32 to vector<2x256xf32>
    %396 = arith.mulf %395, %379 : vector<2x256xf32>
    %397 = vector.broadcast %389 : f32 to vector<2x256xf32>
    %398 = arith.mulf %397, %319 : vector<2x256xf32>
    %399 = arith.addf %396, %398 : vector<2x256xf32>
    %400 = arith.mulf %18, %338 : vector<1x256xf32>
    %401 = arith.mulf %18, %343 : vector<1x256xf32>
    %402 = vector.broadcast %373 : f32 to vector<1x256xf32>
    %403 = arith.mulf %402, %338 : vector<1x256xf32>
    %404 = arith.addf %324, %403 : vector<1x256xf32>
    %405 = vector.broadcast %373 : f32 to vector<1x256xf32>
    %406 = arith.mulf %405, %343 : vector<1x256xf32>
    %407 = arith.addf %327, %406 : vector<1x256xf32>
    %408 = vector.broadcast %373 : f32 to vector<1x256xf32>
    %409 = arith.mulf %408, %400 : vector<1x256xf32>
    %410 = arith.subf %330, %409 : vector<1x256xf32>
    %411 = vector.broadcast %373 : f32 to vector<1x256xf32>
    %412 = arith.mulf %411, %401 : vector<1x256xf32>
    %413 = arith.subf %333, %412 : vector<1x256xf32>
    %414 = vector.broadcast %346 : f32 to vector<1x256xf32>
    %415 = arith.mulf %414, %410 : vector<1x256xf32>
    %416 = vector.broadcast %389 : f32 to vector<1x256xf32>
    %417 = arith.mulf %416, %338 : vector<1x256xf32>
    %418 = arith.addf %415, %417 : vector<1x256xf32>
    %419 = vector.broadcast %346 : f32 to vector<1x256xf32>
    %420 = arith.mulf %419, %413 : vector<1x256xf32>
    %421 = vector.broadcast %389 : f32 to vector<1x256xf32>
    %422 = arith.mulf %421, %343 : vector<1x256xf32>
    %423 = arith.addf %420, %422 : vector<1x256xf32>
    %c5_i32 = arith.constant 5 : i32
    %cst_64 = arith.constant 1.000000e-10 : f32
    %424 = arith.cmpf ogt, %385, %cst_64 : f32
    %425 = arith.extui %424 : i1 to i32
    %426 = arith.sitofp %425 : i32 to f32
    %427 = arith.mulf %5, %394 : vector<2x256xf32>
    %428 = arith.mulf %5, %399 : vector<2x256xf32>
    %429 = arith.mulf %394, %427 : vector<2x256xf32>
    %430 = arith.mulf %399, %428 : vector<2x256xf32>
    %431 = arith.addf %429, %430 : vector<2x256xf32>
    %432 = vector.shape_cast %431 : vector<2x256xf32> to vector<1x2x256xf32>
    %cst_65 = arith.constant dense<0.000000e+00> : vector<1xf32>
    %433 = vector.multi_reduction <add>, %432, %cst_65 [1, 2] : vector<1x2x256xf32> to vector<1xf32>
    %434 = vector.shape_cast %433 : vector<1xf32> to vector<1x1x1xf32>
    %435 = vector.extract %434[0, 0, 0] : f32 from vector<1x1x1xf32>
    %436 = arith.mulf %376, %427 : vector<2x256xf32>
    %437 = arith.mulf %379, %428 : vector<2x256xf32>
    %438 = arith.addf %436, %437 : vector<2x256xf32>
    %439 = vector.shape_cast %438 : vector<2x256xf32> to vector<1x2x256xf32>
    %cst_66 = arith.constant dense<0.000000e+00> : vector<1xf32>
    %440 = vector.multi_reduction <add>, %439, %cst_66 [1, 2] : vector<1x2x256xf32> to vector<1xf32>
    %441 = vector.shape_cast %440 : vector<1xf32> to vector<1x1x1xf32>
    %442 = vector.extract %441[0, 0, 0] : f32 from vector<1x1x1xf32>
    %443 = arith.mulf %427, %427 : vector<2x256xf32>
    %444 = arith.mulf %428, %428 : vector<2x256xf32>
    %445 = arith.addf %443, %444 : vector<2x256xf32>
    %446 = vector.shape_cast %445 : vector<2x256xf32> to vector<1x2x256xf32>
    %cst_67 = arith.constant dense<0.000000e+00> : vector<1xf32>
    %447 = vector.multi_reduction <add>, %446, %cst_67 [1, 2] : vector<1x2x256xf32> to vector<1xf32>
    %448 = vector.shape_cast %447 : vector<1xf32> to vector<1x1x1xf32>
    %449 = vector.extract %448[0, 0, 0] : f32 from vector<1x1x1xf32>
    %cst_68 = arith.constant 0.000000e+00 : f32
    %450 = arith.cmpf one, %435, %cst_68 : f32
    %cst_69 = arith.constant 1.000000e+00 : f32
    %451 = arith.select %450, %435, %cst_69 : f32
    %452 = arith.divf %385, %451 : f32
    %cst_70 = arith.constant 0.000000e+00 : f32
    %453 = arith.select %424, %452, %cst_70 : f32
    %454 = vector.broadcast %453 : f32 to vector<2x256xf32>
    %455 = arith.mulf %454, %427 : vector<2x256xf32>
    %456 = arith.subf %376, %455 : vector<2x256xf32>
    %457 = vector.broadcast %453 : f32 to vector<2x256xf32>
    %458 = arith.mulf %457, %428 : vector<2x256xf32>
    %459 = arith.subf %379, %458 : vector<2x256xf32>
    %cst_71 = arith.constant 2.000000e+00 : f32
    %460 = arith.mulf %cst_71, %453 : f32
    %461 = arith.mulf %460, %442 : f32
    %462 = arith.subf %385, %461 : f32
    %463 = arith.mulf %453, %453 : f32
    %464 = arith.mulf %463, %449 : f32
    %465 = arith.addf %462, %464 : f32
    %cst_72 = arith.constant 0.000000e+00 : f32
    %466 = arith.cmpf one, %385, %cst_72 : f32
    %cst_73 = arith.constant 1.000000e+00 : f32
    %467 = arith.select %466, %385, %cst_73 : f32
    %468 = arith.divf %465, %467 : f32
    %cst_74 = arith.constant 1.000000e+00 : f32
    %469 = arith.select %424, %468, %cst_74 : f32
    %470 = vector.broadcast %426 : f32 to vector<2x256xf32>
    %471 = arith.mulf %470, %456 : vector<2x256xf32>
    %472 = vector.broadcast %469 : f32 to vector<2x256xf32>
    %473 = arith.mulf %472, %394 : vector<2x256xf32>
    %474 = arith.addf %471, %473 : vector<2x256xf32>
    %475 = vector.broadcast %426 : f32 to vector<2x256xf32>
    %476 = arith.mulf %475, %459 : vector<2x256xf32>
    %477 = vector.broadcast %469 : f32 to vector<2x256xf32>
    %478 = arith.mulf %477, %399 : vector<2x256xf32>
    %479 = arith.addf %476, %478 : vector<2x256xf32>
    %480 = arith.mulf %18, %418 : vector<1x256xf32>
    %481 = arith.mulf %18, %423 : vector<1x256xf32>
    %482 = vector.broadcast %453 : f32 to vector<1x256xf32>
    %483 = arith.mulf %482, %418 : vector<1x256xf32>
    %484 = arith.addf %404, %483 : vector<1x256xf32>
    %485 = vector.broadcast %453 : f32 to vector<1x256xf32>
    %486 = arith.mulf %485, %423 : vector<1x256xf32>
    %487 = arith.addf %407, %486 : vector<1x256xf32>
    %488 = vector.broadcast %453 : f32 to vector<1x256xf32>
    %489 = arith.mulf %488, %480 : vector<1x256xf32>
    %490 = arith.subf %410, %489 : vector<1x256xf32>
    %491 = vector.broadcast %453 : f32 to vector<1x256xf32>
    %492 = arith.mulf %491, %481 : vector<1x256xf32>
    %493 = arith.subf %413, %492 : vector<1x256xf32>
    %494 = vector.broadcast %426 : f32 to vector<1x256xf32>
    %495 = arith.mulf %494, %490 : vector<1x256xf32>
    %496 = vector.broadcast %469 : f32 to vector<1x256xf32>
    %497 = arith.mulf %496, %418 : vector<1x256xf32>
    %498 = arith.addf %495, %497 : vector<1x256xf32>
    %499 = vector.broadcast %426 : f32 to vector<1x256xf32>
    %500 = arith.mulf %499, %493 : vector<1x256xf32>
    %501 = vector.broadcast %469 : f32 to vector<1x256xf32>
    %502 = arith.mulf %501, %423 : vector<1x256xf32>
    %503 = arith.addf %500, %502 : vector<1x256xf32>
    %c6_i32 = arith.constant 6 : i32
    %cst_75 = arith.constant 1.000000e-10 : f32
    %504 = arith.cmpf ogt, %465, %cst_75 : f32
    %505 = arith.extui %504 : i1 to i32
    %506 = arith.sitofp %505 : i32 to f32
    %507 = arith.mulf %5, %474 : vector<2x256xf32>
    %508 = arith.mulf %5, %479 : vector<2x256xf32>
    %509 = arith.mulf %474, %507 : vector<2x256xf32>
    %510 = arith.mulf %479, %508 : vector<2x256xf32>
    %511 = arith.addf %509, %510 : vector<2x256xf32>
    %512 = vector.shape_cast %511 : vector<2x256xf32> to vector<1x2x256xf32>
    %cst_76 = arith.constant dense<0.000000e+00> : vector<1xf32>
    %513 = vector.multi_reduction <add>, %512, %cst_76 [1, 2] : vector<1x2x256xf32> to vector<1xf32>
    %514 = vector.shape_cast %513 : vector<1xf32> to vector<1x1x1xf32>
    %515 = vector.extract %514[0, 0, 0] : f32 from vector<1x1x1xf32>
    %516 = arith.mulf %456, %507 : vector<2x256xf32>
    %517 = arith.mulf %459, %508 : vector<2x256xf32>
    %518 = arith.addf %516, %517 : vector<2x256xf32>
    %519 = vector.shape_cast %518 : vector<2x256xf32> to vector<1x2x256xf32>
    %cst_77 = arith.constant dense<0.000000e+00> : vector<1xf32>
    %520 = vector.multi_reduction <add>, %519, %cst_77 [1, 2] : vector<1x2x256xf32> to vector<1xf32>
    %521 = vector.shape_cast %520 : vector<1xf32> to vector<1x1x1xf32>
    %522 = vector.extract %521[0, 0, 0] : f32 from vector<1x1x1xf32>
    %523 = arith.mulf %507, %507 : vector<2x256xf32>
    %524 = arith.mulf %508, %508 : vector<2x256xf32>
    %525 = arith.addf %523, %524 : vector<2x256xf32>
    %526 = vector.shape_cast %525 : vector<2x256xf32> to vector<1x2x256xf32>
    %cst_78 = arith.constant dense<0.000000e+00> : vector<1xf32>
    %527 = vector.multi_reduction <add>, %526, %cst_78 [1, 2] : vector<1x2x256xf32> to vector<1xf32>
    %528 = vector.shape_cast %527 : vector<1xf32> to vector<1x1x1xf32>
    %529 = vector.extract %528[0, 0, 0] : f32 from vector<1x1x1xf32>
    %cst_79 = arith.constant 0.000000e+00 : f32
    %530 = arith.cmpf one, %515, %cst_79 : f32
    %cst_80 = arith.constant 1.000000e+00 : f32
    %531 = arith.select %530, %515, %cst_80 : f32
    %532 = arith.divf %465, %531 : f32
    %cst_81 = arith.constant 0.000000e+00 : f32
    %533 = arith.select %504, %532, %cst_81 : f32
    %534 = vector.broadcast %533 : f32 to vector<2x256xf32>
    %535 = arith.mulf %534, %507 : vector<2x256xf32>
    %536 = arith.subf %456, %535 : vector<2x256xf32>
    %537 = vector.broadcast %533 : f32 to vector<2x256xf32>
    %538 = arith.mulf %537, %508 : vector<2x256xf32>
    %539 = arith.subf %459, %538 : vector<2x256xf32>
    %cst_82 = arith.constant 2.000000e+00 : f32
    %540 = arith.mulf %cst_82, %533 : f32
    %541 = arith.mulf %540, %522 : f32
    %542 = arith.subf %465, %541 : f32
    %543 = arith.mulf %533, %533 : f32
    %544 = arith.mulf %543, %529 : f32
    %545 = arith.addf %542, %544 : f32
    %cst_83 = arith.constant 0.000000e+00 : f32
    %546 = arith.cmpf one, %465, %cst_83 : f32
    %cst_84 = arith.constant 1.000000e+00 : f32
    %547 = arith.select %546, %465, %cst_84 : f32
    %548 = arith.divf %545, %547 : f32
    %cst_85 = arith.constant 1.000000e+00 : f32
    %549 = arith.select %504, %548, %cst_85 : f32
    %550 = vector.broadcast %506 : f32 to vector<2x256xf32>
    %551 = arith.mulf %550, %536 : vector<2x256xf32>
    %552 = vector.broadcast %549 : f32 to vector<2x256xf32>
    %553 = arith.mulf %552, %474 : vector<2x256xf32>
    %554 = arith.addf %551, %553 : vector<2x256xf32>
    %555 = vector.broadcast %506 : f32 to vector<2x256xf32>
    %556 = arith.mulf %555, %539 : vector<2x256xf32>
    %557 = vector.broadcast %549 : f32 to vector<2x256xf32>
    %558 = arith.mulf %557, %479 : vector<2x256xf32>
    %559 = arith.addf %556, %558 : vector<2x256xf32>
    %560 = arith.mulf %18, %498 : vector<1x256xf32>
    %561 = arith.mulf %18, %503 : vector<1x256xf32>
    %562 = vector.broadcast %533 : f32 to vector<1x256xf32>
    %563 = arith.mulf %562, %498 : vector<1x256xf32>
    %564 = arith.addf %484, %563 : vector<1x256xf32>
    %565 = vector.broadcast %533 : f32 to vector<1x256xf32>
    %566 = arith.mulf %565, %503 : vector<1x256xf32>
    %567 = arith.addf %487, %566 : vector<1x256xf32>
    %568 = vector.broadcast %533 : f32 to vector<1x256xf32>
    %569 = arith.mulf %568, %560 : vector<1x256xf32>
    %570 = arith.subf %490, %569 : vector<1x256xf32>
    %571 = vector.broadcast %533 : f32 to vector<1x256xf32>
    %572 = arith.mulf %571, %561 : vector<1x256xf32>
    %573 = arith.subf %493, %572 : vector<1x256xf32>
    %574 = vector.broadcast %506 : f32 to vector<1x256xf32>
    %575 = arith.mulf %574, %570 : vector<1x256xf32>
    %576 = vector.broadcast %549 : f32 to vector<1x256xf32>
    %577 = arith.mulf %576, %498 : vector<1x256xf32>
    %578 = arith.addf %575, %577 : vector<1x256xf32>
    %579 = vector.broadcast %506 : f32 to vector<1x256xf32>
    %580 = arith.mulf %579, %573 : vector<1x256xf32>
    %581 = vector.broadcast %549 : f32 to vector<1x256xf32>
    %582 = arith.mulf %581, %503 : vector<1x256xf32>
    %583 = arith.addf %580, %582 : vector<1x256xf32>
    %c7_i32 = arith.constant 7 : i32
    %cst_86 = arith.constant 1.000000e-10 : f32
    %584 = arith.cmpf ogt, %545, %cst_86 : f32
    %585 = arith.extui %584 : i1 to i32
    %586 = arith.sitofp %585 : i32 to f32
    %587 = arith.mulf %5, %554 : vector<2x256xf32>
    %588 = arith.mulf %5, %559 : vector<2x256xf32>
    %589 = arith.mulf %554, %587 : vector<2x256xf32>
    %590 = arith.mulf %559, %588 : vector<2x256xf32>
    %591 = arith.addf %589, %590 : vector<2x256xf32>
    %592 = vector.shape_cast %591 : vector<2x256xf32> to vector<1x2x256xf32>
    %cst_87 = arith.constant dense<0.000000e+00> : vector<1xf32>
    %593 = vector.multi_reduction <add>, %592, %cst_87 [1, 2] : vector<1x2x256xf32> to vector<1xf32>
    %594 = vector.shape_cast %593 : vector<1xf32> to vector<1x1x1xf32>
    %595 = vector.extract %594[0, 0, 0] : f32 from vector<1x1x1xf32>
    %596 = arith.mulf %536, %587 : vector<2x256xf32>
    %597 = arith.mulf %539, %588 : vector<2x256xf32>
    %598 = arith.addf %596, %597 : vector<2x256xf32>
    %599 = vector.shape_cast %598 : vector<2x256xf32> to vector<1x2x256xf32>
    %cst_88 = arith.constant dense<0.000000e+00> : vector<1xf32>
    %600 = vector.multi_reduction <add>, %599, %cst_88 [1, 2] : vector<1x2x256xf32> to vector<1xf32>
    %601 = vector.shape_cast %600 : vector<1xf32> to vector<1x1x1xf32>
    %602 = vector.extract %601[0, 0, 0] : f32 from vector<1x1x1xf32>
    %603 = arith.mulf %587, %587 : vector<2x256xf32>
    %604 = arith.mulf %588, %588 : vector<2x256xf32>
    %605 = arith.addf %603, %604 : vector<2x256xf32>
    %606 = vector.shape_cast %605 : vector<2x256xf32> to vector<1x2x256xf32>
    %cst_89 = arith.constant dense<0.000000e+00> : vector<1xf32>
    %607 = vector.multi_reduction <add>, %606, %cst_89 [1, 2] : vector<1x2x256xf32> to vector<1xf32>
    %608 = vector.shape_cast %607 : vector<1xf32> to vector<1x1x1xf32>
    %609 = vector.extract %608[0, 0, 0] : f32 from vector<1x1x1xf32>
    %cst_90 = arith.constant 0.000000e+00 : f32
    %610 = arith.cmpf one, %595, %cst_90 : f32
    %cst_91 = arith.constant 1.000000e+00 : f32
    %611 = arith.select %610, %595, %cst_91 : f32
    %612 = arith.divf %545, %611 : f32
    %cst_92 = arith.constant 0.000000e+00 : f32
    %613 = arith.select %584, %612, %cst_92 : f32
    %614 = vector.broadcast %613 : f32 to vector<2x256xf32>
    %615 = arith.mulf %614, %587 : vector<2x256xf32>
    %616 = arith.subf %536, %615 : vector<2x256xf32>
    %617 = vector.broadcast %613 : f32 to vector<2x256xf32>
    %618 = arith.mulf %617, %588 : vector<2x256xf32>
    %619 = arith.subf %539, %618 : vector<2x256xf32>
    %cst_93 = arith.constant 2.000000e+00 : f32
    %620 = arith.mulf %cst_93, %613 : f32
    %621 = arith.mulf %620, %602 : f32
    %622 = arith.subf %545, %621 : f32
    %623 = arith.mulf %613, %613 : f32
    %624 = arith.mulf %623, %609 : f32
    %625 = arith.addf %622, %624 : f32
    %cst_94 = arith.constant 0.000000e+00 : f32
    %626 = arith.cmpf one, %545, %cst_94 : f32
    %cst_95 = arith.constant 1.000000e+00 : f32
    %627 = arith.select %626, %545, %cst_95 : f32
    %628 = arith.divf %625, %627 : f32
    %cst_96 = arith.constant 1.000000e+00 : f32
    %629 = arith.select %584, %628, %cst_96 : f32
    %630 = vector.broadcast %586 : f32 to vector<2x256xf32>
    %631 = arith.mulf %630, %616 : vector<2x256xf32>
    %632 = vector.broadcast %629 : f32 to vector<2x256xf32>
    %633 = arith.mulf %632, %554 : vector<2x256xf32>
    %634 = arith.addf %631, %633 : vector<2x256xf32>
    %635 = vector.broadcast %586 : f32 to vector<2x256xf32>
    %636 = arith.mulf %635, %619 : vector<2x256xf32>
    %637 = vector.broadcast %629 : f32 to vector<2x256xf32>
    %638 = arith.mulf %637, %559 : vector<2x256xf32>
    %639 = arith.addf %636, %638 : vector<2x256xf32>
    %640 = arith.mulf %18, %578 : vector<1x256xf32>
    %641 = arith.mulf %18, %583 : vector<1x256xf32>
    %642 = vector.broadcast %613 : f32 to vector<1x256xf32>
    %643 = arith.mulf %642, %578 : vector<1x256xf32>
    %644 = arith.addf %564, %643 : vector<1x256xf32>
    %645 = vector.broadcast %613 : f32 to vector<1x256xf32>
    %646 = arith.mulf %645, %583 : vector<1x256xf32>
    %647 = arith.addf %567, %646 : vector<1x256xf32>
    %648 = vector.broadcast %613 : f32 to vector<1x256xf32>
    %649 = arith.mulf %648, %640 : vector<1x256xf32>
    %650 = arith.subf %570, %649 : vector<1x256xf32>
    %651 = vector.broadcast %613 : f32 to vector<1x256xf32>
    %652 = arith.mulf %651, %641 : vector<1x256xf32>
    %653 = arith.subf %573, %652 : vector<1x256xf32>
    %654 = vector.broadcast %586 : f32 to vector<1x256xf32>
    %655 = arith.mulf %654, %650 : vector<1x256xf32>
    %656 = vector.broadcast %629 : f32 to vector<1x256xf32>
    %657 = arith.mulf %656, %578 : vector<1x256xf32>
    %658 = arith.addf %655, %657 : vector<1x256xf32>
    %659 = vector.broadcast %586 : f32 to vector<1x256xf32>
    %660 = arith.mulf %659, %653 : vector<1x256xf32>
    %661 = vector.broadcast %629 : f32 to vector<1x256xf32>
    %662 = arith.mulf %661, %583 : vector<1x256xf32>
    %663 = arith.addf %660, %662 : vector<1x256xf32>
    %c8_i32 = arith.constant 8 : i32
    %cst_97 = arith.constant 1.000000e-10 : f32
    %664 = arith.cmpf ogt, %625, %cst_97 : f32
    %665 = arith.extui %664 : i1 to i32
    %666 = arith.sitofp %665 : i32 to f32
    %667 = arith.mulf %5, %634 : vector<2x256xf32>
    %668 = arith.mulf %5, %639 : vector<2x256xf32>
    %669 = arith.mulf %634, %667 : vector<2x256xf32>
    %670 = arith.mulf %639, %668 : vector<2x256xf32>
    %671 = arith.addf %669, %670 : vector<2x256xf32>
    %672 = vector.shape_cast %671 : vector<2x256xf32> to vector<1x2x256xf32>
    %cst_98 = arith.constant dense<0.000000e+00> : vector<1xf32>
    %673 = vector.multi_reduction <add>, %672, %cst_98 [1, 2] : vector<1x2x256xf32> to vector<1xf32>
    %674 = vector.shape_cast %673 : vector<1xf32> to vector<1x1x1xf32>
    %675 = vector.extract %674[0, 0, 0] : f32 from vector<1x1x1xf32>
    %676 = arith.mulf %616, %667 : vector<2x256xf32>
    %677 = arith.mulf %619, %668 : vector<2x256xf32>
    %678 = arith.addf %676, %677 : vector<2x256xf32>
    %679 = vector.shape_cast %678 : vector<2x256xf32> to vector<1x2x256xf32>
    %cst_99 = arith.constant dense<0.000000e+00> : vector<1xf32>
    %680 = vector.multi_reduction <add>, %679, %cst_99 [1, 2] : vector<1x2x256xf32> to vector<1xf32>
    %681 = vector.shape_cast %680 : vector<1xf32> to vector<1x1x1xf32>
    %682 = vector.extract %681[0, 0, 0] : f32 from vector<1x1x1xf32>
    %683 = arith.mulf %667, %667 : vector<2x256xf32>
    %684 = arith.mulf %668, %668 : vector<2x256xf32>
    %685 = arith.addf %683, %684 : vector<2x256xf32>
    %686 = vector.shape_cast %685 : vector<2x256xf32> to vector<1x2x256xf32>
    %cst_100 = arith.constant dense<0.000000e+00> : vector<1xf32>
    %687 = vector.multi_reduction <add>, %686, %cst_100 [1, 2] : vector<1x2x256xf32> to vector<1xf32>
    %688 = vector.shape_cast %687 : vector<1xf32> to vector<1x1x1xf32>
    %689 = vector.extract %688[0, 0, 0] : f32 from vector<1x1x1xf32>
    %cst_101 = arith.constant 0.000000e+00 : f32
    %690 = arith.cmpf one, %675, %cst_101 : f32
    %cst_102 = arith.constant 1.000000e+00 : f32
    %691 = arith.select %690, %675, %cst_102 : f32
    %692 = arith.divf %625, %691 : f32
    %cst_103 = arith.constant 0.000000e+00 : f32
    %693 = arith.select %664, %692, %cst_103 : f32
    %694 = vector.broadcast %693 : f32 to vector<2x256xf32>
    %695 = arith.mulf %694, %667 : vector<2x256xf32>
    %696 = arith.subf %616, %695 : vector<2x256xf32>
    %697 = vector.broadcast %693 : f32 to vector<2x256xf32>
    %698 = arith.mulf %697, %668 : vector<2x256xf32>
    %699 = arith.subf %619, %698 : vector<2x256xf32>
    %cst_104 = arith.constant 2.000000e+00 : f32
    %700 = arith.mulf %cst_104, %693 : f32
    %701 = arith.mulf %700, %682 : f32
    %702 = arith.subf %625, %701 : f32
    %703 = arith.mulf %693, %693 : f32
    %704 = arith.mulf %703, %689 : f32
    %705 = arith.addf %702, %704 : f32
    %cst_105 = arith.constant 0.000000e+00 : f32
    %706 = arith.cmpf one, %625, %cst_105 : f32
    %cst_106 = arith.constant 1.000000e+00 : f32
    %707 = arith.select %706, %625, %cst_106 : f32
    %708 = arith.divf %705, %707 : f32
    %cst_107 = arith.constant 1.000000e+00 : f32
    %709 = arith.select %664, %708, %cst_107 : f32
    %710 = vector.broadcast %666 : f32 to vector<2x256xf32>
    %711 = arith.mulf %710, %696 : vector<2x256xf32>
    %712 = vector.broadcast %709 : f32 to vector<2x256xf32>
    %713 = arith.mulf %712, %634 : vector<2x256xf32>
    %714 = arith.addf %711, %713 : vector<2x256xf32>
    %715 = vector.broadcast %666 : f32 to vector<2x256xf32>
    %716 = arith.mulf %715, %699 : vector<2x256xf32>
    %717 = vector.broadcast %709 : f32 to vector<2x256xf32>
    %718 = arith.mulf %717, %639 : vector<2x256xf32>
    %719 = arith.addf %716, %718 : vector<2x256xf32>
    %720 = arith.mulf %18, %658 : vector<1x256xf32>
    %721 = arith.mulf %18, %663 : vector<1x256xf32>
    %722 = vector.broadcast %693 : f32 to vector<1x256xf32>
    %723 = arith.mulf %722, %658 : vector<1x256xf32>
    %724 = arith.addf %644, %723 : vector<1x256xf32>
    %725 = vector.broadcast %693 : f32 to vector<1x256xf32>
    %726 = arith.mulf %725, %663 : vector<1x256xf32>
    %727 = arith.addf %647, %726 : vector<1x256xf32>
    %728 = vector.broadcast %693 : f32 to vector<1x256xf32>
    %729 = arith.mulf %728, %720 : vector<1x256xf32>
    %730 = arith.subf %650, %729 : vector<1x256xf32>
    %731 = vector.broadcast %693 : f32 to vector<1x256xf32>
    %732 = arith.mulf %731, %721 : vector<1x256xf32>
    %733 = arith.subf %653, %732 : vector<1x256xf32>
    %734 = vector.broadcast %666 : f32 to vector<1x256xf32>
    %735 = arith.mulf %734, %730 : vector<1x256xf32>
    %736 = vector.broadcast %709 : f32 to vector<1x256xf32>
    %737 = arith.mulf %736, %658 : vector<1x256xf32>
    %738 = arith.addf %735, %737 : vector<1x256xf32>
    %739 = vector.broadcast %666 : f32 to vector<1x256xf32>
    %740 = arith.mulf %739, %733 : vector<1x256xf32>
    %741 = vector.broadcast %709 : f32 to vector<1x256xf32>
    %742 = arith.mulf %741, %663 : vector<1x256xf32>
    %743 = arith.addf %740, %742 : vector<1x256xf32>
    %c9_i32 = arith.constant 9 : i32
    %cst_108 = arith.constant 1.000000e-10 : f32
    %744 = arith.cmpf ogt, %705, %cst_108 : f32
    %745 = arith.extui %744 : i1 to i32
    %746 = arith.sitofp %745 : i32 to f32
    %747 = arith.mulf %5, %714 : vector<2x256xf32>
    %748 = arith.mulf %5, %719 : vector<2x256xf32>
    %749 = arith.mulf %714, %747 : vector<2x256xf32>
    %750 = arith.mulf %719, %748 : vector<2x256xf32>
    %751 = arith.addf %749, %750 : vector<2x256xf32>
    %752 = vector.shape_cast %751 : vector<2x256xf32> to vector<1x2x256xf32>
    %cst_109 = arith.constant dense<0.000000e+00> : vector<1xf32>
    %753 = vector.multi_reduction <add>, %752, %cst_109 [1, 2] : vector<1x2x256xf32> to vector<1xf32>
    %754 = vector.shape_cast %753 : vector<1xf32> to vector<1x1x1xf32>
    %755 = vector.extract %754[0, 0, 0] : f32 from vector<1x1x1xf32>
    %756 = arith.mulf %696, %747 : vector<2x256xf32>
    %757 = arith.mulf %699, %748 : vector<2x256xf32>
    %758 = arith.addf %756, %757 : vector<2x256xf32>
    %759 = vector.shape_cast %758 : vector<2x256xf32> to vector<1x2x256xf32>
    %cst_110 = arith.constant dense<0.000000e+00> : vector<1xf32>
    %760 = vector.multi_reduction <add>, %759, %cst_110 [1, 2] : vector<1x2x256xf32> to vector<1xf32>
    %761 = vector.shape_cast %760 : vector<1xf32> to vector<1x1x1xf32>
    %762 = vector.extract %761[0, 0, 0] : f32 from vector<1x1x1xf32>
    %763 = arith.mulf %747, %747 : vector<2x256xf32>
    %764 = arith.mulf %748, %748 : vector<2x256xf32>
    %765 = arith.addf %763, %764 : vector<2x256xf32>
    %766 = vector.shape_cast %765 : vector<2x256xf32> to vector<1x2x256xf32>
    %cst_111 = arith.constant dense<0.000000e+00> : vector<1xf32>
    %767 = vector.multi_reduction <add>, %766, %cst_111 [1, 2] : vector<1x2x256xf32> to vector<1xf32>
    %768 = vector.shape_cast %767 : vector<1xf32> to vector<1x1x1xf32>
    %769 = vector.extract %768[0, 0, 0] : f32 from vector<1x1x1xf32>
    %cst_112 = arith.constant 0.000000e+00 : f32
    %770 = arith.cmpf one, %755, %cst_112 : f32
    %cst_113 = arith.constant 1.000000e+00 : f32
    %771 = arith.select %770, %755, %cst_113 : f32
    %772 = arith.divf %705, %771 : f32
    %cst_114 = arith.constant 0.000000e+00 : f32
    %773 = arith.select %744, %772, %cst_114 : f32
    %774 = vector.broadcast %773 : f32 to vector<2x256xf32>
    %775 = arith.mulf %774, %747 : vector<2x256xf32>
    %776 = arith.subf %696, %775 : vector<2x256xf32>
    %777 = vector.broadcast %773 : f32 to vector<2x256xf32>
    %778 = arith.mulf %777, %748 : vector<2x256xf32>
    %779 = arith.subf %699, %778 : vector<2x256xf32>
    %cst_115 = arith.constant 2.000000e+00 : f32
    %780 = arith.mulf %cst_115, %773 : f32
    %781 = arith.mulf %780, %762 : f32
    %782 = arith.subf %705, %781 : f32
    %783 = arith.mulf %773, %773 : f32
    %784 = arith.mulf %783, %769 : f32
    %785 = arith.addf %782, %784 : f32
    %cst_116 = arith.constant 0.000000e+00 : f32
    %786 = arith.cmpf one, %705, %cst_116 : f32
    %cst_117 = arith.constant 1.000000e+00 : f32
    %787 = arith.select %786, %705, %cst_117 : f32
    %788 = arith.divf %785, %787 : f32
    %cst_118 = arith.constant 1.000000e+00 : f32
    %789 = arith.select %744, %788, %cst_118 : f32
    %790 = vector.broadcast %746 : f32 to vector<2x256xf32>
    %791 = arith.mulf %790, %776 : vector<2x256xf32>
    %792 = vector.broadcast %789 : f32 to vector<2x256xf32>
    %793 = arith.mulf %792, %714 : vector<2x256xf32>
    %794 = arith.addf %791, %793 : vector<2x256xf32>
    %795 = vector.broadcast %746 : f32 to vector<2x256xf32>
    %796 = arith.mulf %795, %779 : vector<2x256xf32>
    %797 = vector.broadcast %789 : f32 to vector<2x256xf32>
    %798 = arith.mulf %797, %719 : vector<2x256xf32>
    %799 = arith.addf %796, %798 : vector<2x256xf32>
    %800 = arith.mulf %18, %738 : vector<1x256xf32>
    %801 = arith.mulf %18, %743 : vector<1x256xf32>
    %802 = vector.broadcast %773 : f32 to vector<1x256xf32>
    %803 = arith.mulf %802, %738 : vector<1x256xf32>
    %804 = arith.addf %724, %803 : vector<1x256xf32>
    %805 = vector.broadcast %773 : f32 to vector<1x256xf32>
    %806 = arith.mulf %805, %743 : vector<1x256xf32>
    %807 = arith.addf %727, %806 : vector<1x256xf32>
    %808 = vector.broadcast %773 : f32 to vector<1x256xf32>
    %809 = arith.mulf %808, %800 : vector<1x256xf32>
    %810 = arith.subf %730, %809 : vector<1x256xf32>
    %811 = vector.broadcast %773 : f32 to vector<1x256xf32>
    %812 = arith.mulf %811, %801 : vector<1x256xf32>
    %813 = arith.subf %733, %812 : vector<1x256xf32>
    %814 = vector.broadcast %746 : f32 to vector<1x256xf32>
    %815 = arith.mulf %814, %810 : vector<1x256xf32>
    %816 = vector.broadcast %789 : f32 to vector<1x256xf32>
    %817 = arith.mulf %816, %738 : vector<1x256xf32>
    %818 = arith.addf %815, %817 : vector<1x256xf32>
    %819 = vector.broadcast %746 : f32 to vector<1x256xf32>
    %820 = arith.mulf %819, %813 : vector<1x256xf32>
    %821 = vector.broadcast %789 : f32 to vector<1x256xf32>
    %822 = arith.mulf %821, %743 : vector<1x256xf32>
    %823 = arith.addf %820, %822 : vector<1x256xf32>
    %824 = vector.shape_cast %804 : vector<1x256xf32> to vector<1x1x256xf32>
    %c0_119 = arith.constant 0 : index
    %c0_120 = arith.constant 0 : index
    %c0_121 = arith.constant 0 : index
    %825 = vector.load %arg4[%c0_119, %c0_120, %c0_121] : memref<1x1x256xf32, #tpu.memory_space<vmem>>, vector<1x1x256xf32>
    tpu.vector_store %arg4[%c0_119, %c0_120, %c0_121], %824 {strides = array<i32>} : memref<1x1x256xf32, #tpu.memory_space<vmem>>, vector<1x1x256xf32>,
    %826 = vector.shape_cast %807 : vector<1x256xf32> to vector<1x1x256xf32>
    %c0_122 = arith.constant 0 : index
    %c0_123 = arith.constant 0 : index
    %c0_124 = arith.constant 0 : index
    %827 = vector.load %arg5[%c0_122, %c0_123, %c0_124] : memref<1x1x256xf32, #tpu.memory_space<vmem>>, vector<1x1x256xf32>
    tpu.vector_store %arg5[%c0_122, %c0_123, %c0_124], %826 {strides = array<i32>} : memref<1x1x256xf32, #tpu.memory_space<vmem>>, vector<1x1x256xf32>,
    return
  }
  func.func @transform_0(%arg0: i32) -> (i32, i32) {
    %c0_i32 = arith.constant 0 : i32
    %c0_i32_0 = arith.constant 0 : i32
    %c0_i32_1 = arith.constant 0 : i32
    return %c0_i32, %c0_i32_0 : i32, i32
  }
  func.func @transform_1(%arg0: i32) -> (i32, i32) {
    %c0_i32 = arith.constant 0 : i32
    %c0_i32_0 = arith.constant 0 : i32
    %c0_i32_1 = arith.constant 0 : i32
    return %c0_i32, %c0_i32_0 : i32, i32
  }
  func.func @transform_2(%arg0: i32) -> (i32, i32) {
    %c0_i32 = arith.constant 0 : i32
    %c0_i32_0 = arith.constant 0 : i32
    %c0_i32_1 = arith.constant 0 : i32
    return %c0_i32, %c0_i32_0 : i32, i32
  }
  func.func @transform_3(%arg0: i32) -> (i32, i32, i32) {
    %c0_i32 = arith.constant 0 : i32
    %c0_i32_0 = arith.constant 0 : i32
    %c0_i32_1 = arith.constant 0 : i32
    return %arg0, %c0_i32, %c0_i32_0 : i32, i32, i32
  }
  func.func @transform_4(%arg0: i32) -> (i32, i32, i32) {
    %c0_i32 = arith.constant 0 : i32
    %c0_i32_0 = arith.constant 0 : i32
    %c0_i32_1 = arith.constant 0 : i32
    return %arg0, %c0_i32, %c0_i32_0 : i32, i32, i32
  }
}

</mosaic_0001>

<llo_original>
// kernel: tpu_custom_call.1
$region0: #{tpu_custom_call.1}
  #allocation0 [shape = 'u32[]', space=smem, size = 0x4, offset = 0x4, fixed_abs, tag = 'smem constant byte address 0x4 - core index']
  #allocation1 [shape = 'u32[144,128]{1,0:T(1,128)}', space=vmem, size = 0x12000, scoped, tag = 'internal scratch']
  %s0 = inlined_call_operand.hbm [shape: f32[2,256], index: 0, kind: input, shape index: {}]
  %s1 = inlined_call_operand.hbm [shape: f32[2,256], index: 1, kind: input, shape index: {}]
  %s2 = inlined_call_operand.vmem [shape: f32[2,256], index: 2, kind: input, shape index: {}]
  %s3 = inlined_call_operand.hbm [shape: f32[2,1,256], index: 3, kind: output, shape index: {0}]
  %s4 = inlined_call_operand.hbm [shape: f32[2,1,256], index: 4, kind: output, shape index: {1}]
  %5 = xla_tuple %s3, %s4
  %s6 = sld [smem:[#allocation0]]
  $region61: #{tpu_custom_call.1} parent=0
    _
  %s8 = ssub.s32 1, %s6
  %s9 = scalar_select 0, %s8, %s6
  $region1: #{tpu_custom_call.1} parent=0
    #allocation2 [shape = 'u8[2048]{0}', space=vmem, size = 0x800, scoped, tag = 'input window, operand 0, single buffered']
    #allocation3 [shape = 's32[2]{0}', space=sflag, size = 0x8, scoped, tag = 'scoped memory for tpu_custom_call.1']
    #allocation4 [shape = 's32[2]{0}', space=sflag, size = 0x8, scoped, tag = 'scoped memory for tpu_custom_call.1']
    #allocation5 [shape = 'u8[2048]{0}', space=vmem, size = 0x800, scoped, tag = 'input window, operand 1, single buffered']
    #allocation6 [shape = 's32[1]{0}', space=sflag, size = 0x4, scoped, tag = 'scoped memory for tpu_custom_call.1']
    #allocation7 [shape = 'u8[2048]{0}', space=vmem, size = 0x800, scoped, tag = 'output window, operand 0']
    #allocation8 [shape = 'u8[2048]{0}', space=vmem, size = 0x800, scoped, tag = 'output window, operand 1']
    #allocation9 [shape = 's32[2]{0}', space=sflag, size = 0x8, scoped, tag = 'scoped memory for tpu_custom_call.1']
    %10 = vsyncpa [#allocation3], 0
    %11 = vsyncpa [#allocation6], 0
    %12 = vsyncpa [#allocation4], 0
    %s13 = scalar_lea.sflag [#allocation4], 1
    %14 = vsyncpa %s13, 0
    %15 = vsyncpa [#allocation9], 0
    %s16 = scalar_lea.sflag [#allocation9], 1
    %17 = vsyncpa %s16, 0
    loop: start=0, step=1, limit=4
    $region2: #{tpu_custom_call.1} parent=1 // loop_pre_header
      _
    $region3: #{tpu_custom_call.1} parent=1 // loop_header
      %s19 = sphi 0, %s23
      %p20 = scmp.ge.s32.totalorder %s19, 4
      %s27 = sphi 0, %s27
      %s29 = sphi 0, %s27
      %s30 = sphi 0, %s29
      %s44 = sphi 0, %s30
      %s48 = sphi 0, %s48
      %s50 = sphi 0, %s48
      %s51 = sphi 0, %s50
      %s65 = sphi 0, %s51
      %s69 = sphi 0, %s69
      %s71 = sphi 0, %s69
      %s72 = sphi 0, %s71
      %s86 = sphi 0, %s72
      %s92 = sphi 0, %s94
      %s95 = sphi 0, %s92
      %s96 = sphi 0, %s95
      %s112 = sphi 0, %s96
      %s118 = sphi 0, %s120
      %s121 = sphi 0, %s118
      %s122 = sphi 0, %s121
      %s138 = sphi 0, %s122
    $region4: #{tpu_custom_call.1} parent=1 // loop_header_branch
      %22 = sbr.rel (%p20) target = $region8
    $region5: #{tpu_custom_call.1} parent=1 // loop_body
      %s24 = ssub.s32 %s19, 1
      %s25 = ssub.s32 %s19, 2
      %s26 = sadd.s32 %s19, 1
      %s28 = sadd.s32 %s27, 1
      %p31 = scmp.eq.s32.totalorder %s19, 1
      %p32 = scmp.ne.s32.totalorder %s27, %s29
      %p33 = scmp.eq.s32.totalorder %s19, 0
      %p34 = por %p32, %p33
      %p35 = scmp.ne.s32.totalorder %s27, %s29
      %p36 = scmp.eq.s32.totalorder %s24, 1
      %p37 = por %p35, %p36
      %p38 = scmp.ne.s32.totalorder %s29, %s30
      %p39 = scmp.eq.s32.totalorder %s24, 0
      %p40 = por %p38, %p39
      %p41 = scmp.ne.s32.totalorder %s29, %s30
      %p42 = scmp.eq.s32.totalorder %s25, 1
      %p43 = por %p41, %p42
      %p45 = scmp.ne.s32.totalorder %s30, %s44
      %p46 = scmp.eq.s32.totalorder %s25, 0
      %p47 = por %p45, %p46
      %s49 = sadd.s32 %s48, 1
      %p52 = scmp.eq.s32.totalorder %s19, 1
      %p53 = scmp.ne.s32.totalorder %s48, %s50
      %p54 = scmp.eq.s32.totalorder %s19, 0
      %p55 = por %p53, %p54
      %p56 = scmp.ne.s32.totalorder %s48, %s50
      %p57 = scmp.eq.s32.totalorder %s24, 1
      %p58 = por %p56, %p57
      %p59 = scmp.ne.s32.totalorder %s50, %s51
      %p60 = scmp.eq.s32.totalorder %s24, 0
      %p61 = por %p59, %p60
      %p62 = scmp.ne.s32.totalorder %s50, %s51
      %p63 = scmp.eq.s32.totalorder %s25, 1
      %p64 = por %p62, %p63
      %p66 = scmp.ne.s32.totalorder %s51, %s65
      %p67 = scmp.eq.s32.totalorder %s25, 0
      %p68 = por %p66, %p67
      %s70 = sadd.s32 %s69, 1
      %p73 = scmp.eq.s32.totalorder %s19, 1
      %p74 = scmp.ne.s32.totalorder %s69, %s71
      %p75 = scmp.eq.s32.totalorder %s19, 0
      %p76 = por %p74, %p75
      %p77 = scmp.ne.s32.totalorder %s69, %s71
      %p78 = scmp.eq.s32.totalorder %s24, 1
      %p79 = por %p77, %p78
      %p80 = scmp.ne.s32.totalorder %s71, %s72
      %p81 = scmp.eq.s32.totalorder %s24, 0
      %p82 = por %p80, %p81
      %p83 = scmp.ne.s32.totalorder %s71, %s72
      %p84 = scmp.eq.s32.totalorder %s25, 1
      %p85 = por %p83, %p84
      %p87 = scmp.ne.s32.totalorder %s72, %s86
      %p88 = scmp.eq.s32.totalorder %s25, 0
      %p89 = por %p87, %p88
      %s90 = ssub.s32 %s19, %s26
      %p91 = scmp.eq.s32.totalorder %s90, 0
      %s93 = sadd.s32 %s92, 1
      %s94 = scalar_select %p91, %s92, %s93
      %p97 = pneg %p91
      %p98 = scmp.eq.s32.totalorder %s19, 1
      %p99 = por %p97, %p98
      %p100 = scmp.ne.s32.totalorder %s92, %s95
      %p101 = scmp.eq.s32.totalorder %s19, 0
      %p102 = por %p100, %p101
      %p103 = scmp.ne.s32.totalorder %s92, %s95
      %p104 = scmp.eq.s32.totalorder %s24, 1
      %p105 = por %p103, %p104
      %p106 = scmp.ne.s32.totalorder %s95, %s96
      %p107 = scmp.eq.s32.totalorder %s24, 0
      %p108 = por %p106, %p107
      %p109 = scmp.ne.s32.totalorder %s95, %s96
      %p110 = scmp.eq.s32.totalorder %s25, 1
      %p111 = por %p109, %p110
      %p113 = scmp.ne.s32.totalorder %s96, %s112
      %p114 = scmp.eq.s32.totalorder %s25, 0
      %p115 = por %p113, %p114
      %s116 = ssub.s32 %s19, %s26
      %p117 = scmp.eq.s32.totalorder %s116, 0
      %s119 = sadd.s32 %s118, 1
      %s120 = scalar_select %p117, %s118, %s119
      %p123 = pneg %p117
      %p124 = scmp.eq.s32.totalorder %s19, 1
      %p125 = por %p123, %p124
      %p126 = scmp.ne.s32.totalorder %s118, %s121
      %p127 = scmp.eq.s32.totalorder %s19, 0
      %p128 = por %p126, %p127
      %p129 = scmp.ne.s32.totalorder %s118, %s121
      %p130 = scmp.eq.s32.totalorder %s24, 1
      %p131 = por %p129, %p130
      %p132 = scmp.ne.s32.totalorder %s121, %s122
      %p133 = scmp.eq.s32.totalorder %s24, 0
      %p134 = por %p132, %p133
      %p135 = scmp.ne.s32.totalorder %s121, %s122
      %p136 = scmp.eq.s32.totalorder %s25, 1
      %p137 = por %p135, %p136
      %p139 = scmp.ne.s32.totalorder %s122, %s138
      %p140 = scmp.eq.s32.totalorder %s25, 0
      %p141 = por %p139, %p140
      %p142 = scmp.le.s32.totalorder 1, %s19
      %p143 = scmp.lt.s32.totalorder %s19, 3
      %p144 = pnand %p142, %p143
      %p145 = pneg %p144
      // Predicated region
      $region9: #{tpu_custom_call.1} parent=5 // pred_check
        _
      $region10: #{tpu_custom_call.1} parent=5 // pred_check_branch
        %147 = sbr.rel (%p144) target = $region12
      $region11: #{tpu_custom_call.1} parent=5 // pred_region
        %s148 = ssub.s32 %s19, 1
        // Predicated region
        $region13: #{tpu_custom_call.1} parent=11 // pred_check
          %p149 = pneg %p40
        $region14: #{tpu_custom_call.1} parent=11 // pred_check_branch
          %151 = sbr.rel (%p149) target = $region16
        $region15: #{tpu_custom_call.1} parent=11 // pred_region
          %s153 = ssub.s32 64, 64
          %154 = vsyncadd [#allocation3], %s153
          %s156 = sshll.u32 [#allocation2], 4
          %s157 = int_to_ptr.vmem [resolvable:$true] %s156
          %159 = dma.hbm_to_vmem [thread:$0]  %s0, 64, %s157, [#allocation3]
        $region16: #{tpu_custom_call.1} parent=11 // pred_fallthru
          _
        // Predicated region
        $region17: #{tpu_custom_call.1} parent=11 // pred_check
          %p160 = pneg %p61
        $region18: #{tpu_custom_call.1} parent=11 // pred_check_branch
          %162 = sbr.rel (%p160) target = $region20
        $region19: #{tpu_custom_call.1} parent=11 // pred_region
          %s164 = ssub.s32 64, 64
          %165 = vsyncadd [#allocation6], %s164
          %s167 = sshll.u32 [#allocation5], 4
          %s168 = int_to_ptr.vmem [resolvable:$true] %s167
          %170 = dma.hbm_to_vmem [thread:$0]  %s1, 64, %s168, [#allocation6]
        $region20: #{tpu_custom_call.1} parent=11 // pred_fallthru
          _
        // Predicated region
        $region21: #{tpu_custom_call.1} parent=11 // pred_check
          %p171 = pneg %p82
        $region22: #{tpu_custom_call.1} parent=11 // pred_check_branch
          %173 = sbr.rel (%p171) target = $region24
        $region23: #{tpu_custom_call.1} parent=11 // pred_region
          _
        $region24: #{tpu_custom_call.1} parent=11 // pred_fallthru
          _
      $region12: #{tpu_custom_call.1} parent=5 // pred_fallthru
        _
      %p174 = scmp.lt.s32.totalorder %s19, 2
      // Predicated region
      $region25: #{tpu_custom_call.1} parent=5 // pred_check
        %p175 = pneg %p174
      $region26: #{tpu_custom_call.1} parent=5 // pred_check_branch
        %177 = sbr.rel (%p175) target = $region28
      $region27: #{tpu_custom_call.1} parent=5 // pred_region
        _
      $region28: #{tpu_custom_call.1} parent=5 // pred_fallthru
        _
      %p178 = scmp.le.s32.totalorder 1, %s19
      %p179 = scmp.lt.s32.totalorder %s19, 3
      %p180 = pnand %p178, %p179
      %p181 = pneg %p180
      // Predicated region
      $region29: #{tpu_custom_call.1} parent=5 // pred_check
        _
      $region30: #{tpu_custom_call.1} parent=5 // pred_check_branch
        %183 = sbr.rel (%p180) target = $region32
      $region31: #{tpu_custom_call.1} parent=5 // pred_region
        %s184 = ssub.s32 %s19, 1
        // Predicated region
        $region33: #{tpu_custom_call.1} parent=31 // pred_check
          %p185 = pneg %p40
        $region34: #{tpu_custom_call.1} parent=31 // pred_check_branch
          %187 = sbr.rel (%p185) target = $region36
        $region35: #{tpu_custom_call.1} parent=31 // pred_region
          %188 = dma.done [#allocation3], 64
        $region36: #{tpu_custom_call.1} parent=31 // pred_fallthru
          _
        // Predicated region
        $region37: #{tpu_custom_call.1} parent=31 // pred_check
          %p189 = pneg %p61
        $region38: #{tpu_custom_call.1} parent=31 // pred_check_branch
          %191 = sbr.rel (%p189) target = $region40
        $region39: #{tpu_custom_call.1} parent=31 // pred_region
          %192 = dma.done [#allocation6], 64
        $region40: #{tpu_custom_call.1} parent=31 // pred_fallthru
          _
        %p193 = pneg %p40
        %p194 = pneg %p37
        %p195 = pneg %p61
        %p196 = pneg %p58
        %p197 = pneg %p82
        %p198 = pneg %p79
        %p199 = pneg %p108
        %p200 = pneg %p105
        %s201 = sand.u32 %s95, 1
        %s202 = scalar_lea.sflag [#allocation4], %s201
        %s203 = sand.u32 %s95, 1
        %s204 = smul.addr %s203, 2
        %s205 = scalar_lea.vmem [#allocation7], %s204
        %p206 = pneg %p134
        %p207 = pneg %p131
        %s208 = sand.u32 %s121, 1
        %s209 = scalar_lea.sflag [#allocation9], %s208
        %s210 = sand.u32 %s121, 1
        %s211 = smul.addr %s210, 2
        %s212 = scalar_lea.vmem [#allocation8], %s211
        %v213 = vlaneseq
        %v214 = vshrl.u32 %v213, 7
        %v215 = vstv %s24
        %vm216 = vcmp.ge.s32.totalorder %v214, %v215
        %v217 = vsel %vm216, 1, 0
        %v218 = vcvt.s32.f32 %v217
        %v219 = vld [vmem:[%s2] sm:$0xf]
        %v220 = vld [vmem:[#allocation2] sm:$0xf]
        %v223 = vunpack.c.l.s4 269488144
        %v224 = vunpack.c.0.s8 %v223
        %v225 = vlaneseq
        %v226 = vshrl.u32 %v225, 7
        %v227 = vsub.s32 %v224, %v226
        %v228 = vrot.slane %v218, %v227
        %v230 = vmul.f32 %v220, %v228
        %v231 = vld [vmem:[#allocation5] sm:$0xf]
        %v232 = vmul.f32 %v231, %v228
        %v233 = vmul.f32 %v230, %v230
        %v234 = vmul.f32 %v232, %v232
        %v235 = vadd.f32 %v233, %v234
        %v238 = vunpack.c.l.s4 1983009808
        %v239 = vunpack.c.0.s8 %v238
        %v240 = vlaneseq
        %v241 = vshrl.u32 %v240, 7
        %v242 = vsub.s32 %v239, %v241
        %v243 = vrot.slane %v235, %v242
        %v244 = vcombine.high %v243, %v243
        %vm247 = vcmask 1041408
        %v248 = vsel %vm247, %v243, 0.0
        %v249 = vsel %vm247, %v244, 0.0
        %v250 = vadd.f32 %v248, %v249
        %251 = vadd.xlane.f32.xlu0 %v250
        %v252 = vpop.xlane.xlu0 %251
        %v253 = vrot.slane %v252, 4
        %v254 = vadd.f32 %v252, %v253
        %v255 = vrot.slane %v254, 2
        %v256 = vadd.f32 %v254, %v255
        %v257 = vrot.slane %v256, 1
        %v258 = vadd.f32 %v256, %v257
        %s259 = vtos %v258
        %s260 = sshra.s32 %s24, 1
        %s261 = sand.u32 %s24, 1
        %s262 = sshra.s32 %s24, 1
        %s263 = sand.u32 %s24, 1
        %s264 = smul.u32 %s260, 2
        %s265 = smul.u32 %s264, 2
        %s266 = sadd.s32 %s265, %s263
        %s267 = scalar_lea.vmem %s2, %s266
        %v268 = vld [vmem:[%s267] ss:$2 sm:$0x3]
        %s269 = scalar_lea.vmem [#allocation2], %s266
        %v270 = vld [vmem:[%s269] ss:$2 sm:$0x3]
        %s271 = scalar_lea.vmem [#allocation5], %s266
        %v272 = vld [vmem:[%s271] ss:$2 sm:$0x3]
        %p273 = scmp.gt.f32.partialorder %s259, 1e-10
        %s274 = scalar_select %p273, 1, 0
        %s275 = scvt.s32.f32 %s274
        %v276 = vmul.f32 %v219, %v230
        %v277 = vmul.f32 %v219, %v232
        %v278 = vmul.f32 %v230, %v276
        %v279 = vmul.f32 %v232, %v277
        %v280 = vadd.f32 %v278, %v279
        %v283 = vunpack.c.l.s4 1983009808
        %v284 = vunpack.c.0.s8 %v283
        %v285 = vlaneseq
        %v286 = vshrl.u32 %v285, 7
        %v287 = vsub.s32 %v284, %v286
        %v288 = vrot.slane %v280, %v287
        %v289 = vcombine.high %v288, %v288
        %v292 = vsel %vm247, %v288, 0.0
        %v293 = vsel %vm247, %v289, 0.0
        %v294 = vadd.f32 %v292, %v293
        %295 = vadd.xlane.f32.xlu0 %v294
        %v296 = vpop.xlane.xlu0 %295
        %v297 = vrot.slane %v296, 4
        %v298 = vadd.f32 %v296, %v297
        %v299 = vrot.slane %v298, 2
        %v300 = vadd.f32 %v298, %v299
        %v301 = vrot.slane %v300, 1
        %v302 = vadd.f32 %v300, %v301
        %s303 = vtos %v302
        %v304 = vmul.f32 %v276, %v276
        %v305 = vmul.f32 %v277, %v277
        %v306 = vadd.f32 %v304, %v305
        %v309 = vunpack.c.l.s4 1983009808
        %v310 = vunpack.c.0.s8 %v309
        %v311 = vlaneseq
        %v312 = vshrl.u32 %v311, 7
        %v313 = vsub.s32 %v310, %v312
        %v314 = vrot.slane %v306, %v313
        %v315 = vcombine.high %v314, %v314
        %v318 = vsel %vm247, %v314, 0.0
        %v319 = vsel %vm247, %v315, 0.0
        %v320 = vadd.f32 %v318, %v319
        %321 = vadd.xlane.f32.xlu0 %v320
        %v322 = vpop.xlane.xlu0 %321
        %v323 = vrot.slane %v322, 4
        %v324 = vadd.f32 %v322, %v323
        %v325 = vrot.slane %v324, 2
        %v326 = vadd.f32 %v324, %v325
        %v327 = vrot.slane %v326, 1
        %v328 = vadd.f32 %v326, %v327
        %s329 = vtos %v328
        %p330 = scmp.ne.f32.partialorder %s303, 0.0
        %s331 = scalar_select %p330, %s303, 1.0
        %v332 = vstv %s331
        %v333 = vrcp.pop %v332
        %s334 = vtos %v333
        %s335 = smul.f32 %s259, %s334
        %s336 = scalar_select %p273, %s335, 0.0
        %v337 = vstv %s336
        %v338 = vmul.f32 %v337, %v276
        %v339 = vsub.f32 %v230, %v338
        %v340 = vmul.f32 %v337, %v277
        %v341 = vsub.f32 %v232, %v340
        %s342 = smul.f32 %s336, 2.0
        %s343 = smul.f32 %s342, %s303
        %s344 = ssub.f32 %s259, %s343
        %s345 = smul.f32 %s336, %s336
        %s346 = smul.f32 %s345, %s329
        %s347 = sadd.f32 %s344, %s346
        %p348 = scmp.ne.f32.partialorder %s259, 0.0
        %s349 = scalar_select %p348, %s259, 1.0
        %v350 = vstv %s349
        %v351 = vrcp.pop %v350
        %s352 = vtos %v351
        %s353 = smul.f32 %s347, %s352
        %s354 = scalar_select %p273, %s353, 1.0
        %v355 = vstv %s275
        %v356 = vmul.f32 %v355, %v339
        %v357 = vstv %s354
        %v358 = vmul.f32 %v357, %v230
        %v359 = vadd.f32 %v356, %v358
        %v360 = vmul.f32 %v355, %v341
        %v361 = vmul.f32 %v357, %v232
        %v362 = vadd.f32 %v360, %v361
        %v363 = vmul.f32 %v268, %v270
        %v364 = vmul.f32 %v268, %v272
        %v365 = vmul.f32 %v337, %v270
        %v366 = vadd.f32 %v365, 0.0
        %v367 = vmul.f32 %v337, %v272
        %v368 = vadd.f32 %v367, 0.0
        %v369 = vmul.f32 %v337, %v363
        %v370 = vsub.f32 %v270, %v369
        %v371 = vmul.f32 %v337, %v364
        %v372 = vsub.f32 %v272, %v371
        %v373 = vmul.f32 %v355, %v370
        %v374 = vmul.f32 %v357, %v270
        %v375 = vadd.f32 %v373, %v374
        %v376 = vmul.f32 %v355, %v372
        %v377 = vmul.f32 %v357, %v272
        %v378 = vadd.f32 %v376, %v377
        %p379 = scmp.gt.f32.partialorder %s347, 1e-10
        %s380 = scalar_select %p379, 1, 0
        %s381 = scvt.s32.f32 %s380
        %v382 = vmul.f32 %v219, %v359
        %v383 = vmul.f32 %v219, %v362
        %v384 = vmul.f32 %v359, %v382
        %v385 = vmul.f32 %v362, %v383
        %v386 = vadd.f32 %v384, %v385
        %v389 = vunpack.c.l.s4 1983009808
        %v390 = vunpack.c.0.s8 %v389
        %v391 = vlaneseq
        %v392 = vshrl.u32 %v391, 7
        %v393 = vsub.s32 %v390, %v392
        %v394 = vrot.slane %v386, %v393
        %v395 = vcombine.high %v394, %v394
        %v398 = vsel %vm247, %v394, 0.0
        %v399 = vsel %vm247, %v395, 0.0
        %v400 = vadd.f32 %v398, %v399
        %401 = vadd.xlane.f32.xlu0 %v400
        %v402 = vpop.xlane.xlu0 %401
        %v403 = vrot.slane %v402, 4
        %v404 = vadd.f32 %v402, %v403
        %v405 = vrot.slane %v404, 2
        %v406 = vadd.f32 %v404, %v405
        %v407 = vrot.slane %v406, 1
        %v408 = vadd.f32 %v406, %v407
        %s409 = vtos %v408
        %v410 = vmul.f32 %v339, %v382
        %v411 = vmul.f32 %v341, %v383
        %v412 = vadd.f32 %v410, %v411
        %v415 = vunpack.c.l.s4 1983009808
        %v416 = vunpack.c.0.s8 %v415
        %v417 = vlaneseq
        %v418 = vshrl.u32 %v417, 7
        %v419 = vsub.s32 %v416, %v418
        %v420 = vrot.slane %v412, %v419
        %v421 = vcombine.high %v420, %v420
        %v424 = vsel %vm247, %v420, 0.0
        %v425 = vsel %vm247, %v421, 0.0
        %v426 = vadd.f32 %v424, %v425
        %427 = vadd.xlane.f32.xlu0 %v426
        %v428 = vpop.xlane.xlu0 %427
        %v429 = vrot.slane %v428, 4
        %v430 = vadd.f32 %v428, %v429
        %v431 = vrot.slane %v430, 2
        %v432 = vadd.f32 %v430, %v431
        %v433 = vrot.slane %v432, 1
        %v434 = vadd.f32 %v432, %v433
        %s435 = vtos %v434
        %v436 = vmul.f32 %v382, %v382
        %v437 = vmul.f32 %v383, %v383
        %v438 = vadd.f32 %v436, %v437
        %v441 = vunpack.c.l.s4 1983009808
        %v442 = vunpack.c.0.s8 %v441
        %v443 = vlaneseq
        %v444 = vshrl.u32 %v443, 7
        %v445 = vsub.s32 %v442, %v444
        %v446 = vrot.slane %v438, %v445
        %v447 = vcombine.high %v446, %v446
        %v450 = vsel %vm247, %v446, 0.0
        %v451 = vsel %vm247, %v447, 0.0
        %v452 = vadd.f32 %v450, %v451
        %453 = vadd.xlane.f32.xlu0 %v452
        %v454 = vpop.xlane.xlu0 %453
        %v455 = vrot.slane %v454, 4
        %v456 = vadd.f32 %v454, %v455
        %v457 = vrot.slane %v456, 2
        %v458 = vadd.f32 %v456, %v457
        %v459 = vrot.slane %v458, 1
        %v460 = vadd.f32 %v458, %v459
        %s461 = vtos %v460
        %p462 = scmp.ne.f32.partialorder %s409, 0.0
        %s463 = scalar_select %p462, %s409, 1.0
        %v464 = vstv %s463
        %v465 = vrcp.pop %v464
        %s466 = vtos %v465
        %s467 = smul.f32 %s347, %s466
        %s468 = scalar_select %p379, %s467, 0.0
        %v469 = vstv %s468
        %v470 = vmul.f32 %v469, %v382
        %v471 = vsub.f32 %v339, %v470
        %v472 = vmul.f32 %v469, %v383
        %v473 = vsub.f32 %v341, %v472
        %s474 = smul.f32 %s468, 2.0
        %s475 = smul.f32 %s474, %s435
        %s476 = ssub.f32 %s347, %s475
        %s477 = smul.f32 %s468, %s468
        %s478 = smul.f32 %s477, %s461
        %s479 = sadd.f32 %s476, %s478
        %p480 = scmp.ne.f32.partialorder %s347, 0.0
        %s481 = scalar_select %p480, %s347, 1.0
        %v482 = vstv %s481
        %v483 = vrcp.pop %v482
        %s484 = vtos %v483
        %s485 = smul.f32 %s479, %s484
        %s486 = scalar_select %p379, %s485, 1.0
        %v487 = vstv %s381
        %v488 = vmul.f32 %v487, %v471
        %v489 = vstv %s486
        %v490 = vmul.f32 %v489, %v359
        %v491 = vadd.f32 %v488, %v490
        %v492 = vmul.f32 %v487, %v473
        %v493 = vmul.f32 %v489, %v362
        %v494 = vadd.f32 %v492, %v493
        %v495 = vmul.f32 %v268, %v375
        %v496 = vmul.f32 %v268, %v378
        %v497 = vmul.f32 %v469, %v375
        %v498 = vadd.f32 %v366, %v497
        %v499 = vmul.f32 %v469, %v378
        %v500 = vadd.f32 %v368, %v499
        %v501 = vmul.f32 %v469, %v495
        %v502 = vsub.f32 %v370, %v501
        %v503 = vmul.f32 %v469, %v496
        %v504 = vsub.f32 %v372, %v503
        %v505 = vmul.f32 %v487, %v502
        %v506 = vmul.f32 %v489, %v375
        %v507 = vadd.f32 %v505, %v506
        %v508 = vmul.f32 %v487, %v504
        %v509 = vmul.f32 %v489, %v378
        %v510 = vadd.f32 %v508, %v509
        %p511 = scmp.gt.f32.partialorder %s479, 1e-10
        %s512 = scalar_select %p511, 1, 0
        %s513 = scvt.s32.f32 %s512
        %v514 = vmul.f32 %v219, %v491
        %v515 = vmul.f32 %v219, %v494
        %v516 = vmul.f32 %v491, %v514
        %v517 = vmul.f32 %v494, %v515
        %v518 = vadd.f32 %v516, %v517
        %v521 = vunpack.c.l.s4 1983009808
        %v522 = vunpack.c.0.s8 %v521
        %v523 = vlaneseq
        %v524 = vshrl.u32 %v523, 7
        %v525 = vsub.s32 %v522, %v524
        %v526 = vrot.slane %v518, %v525
        %v527 = vcombine.high %v526, %v526
        %v530 = vsel %vm247, %v526, 0.0
        %v531 = vsel %vm247, %v527, 0.0
        %v532 = vadd.f32 %v530, %v531
        %533 = vadd.xlane.f32.xlu0 %v532
        %v534 = vpop.xlane.xlu0 %533
        %v535 = vrot.slane %v534, 4
        %v536 = vadd.f32 %v534, %v535
        %v537 = vrot.slane %v536, 2
        %v538 = vadd.f32 %v536, %v537
        %v539 = vrot.slane %v538, 1
        %v540 = vadd.f32 %v538, %v539
        %s541 = vtos %v540
        %v542 = vmul.f32 %v471, %v514
        %v543 = vmul.f32 %v473, %v515
        %v544 = vadd.f32 %v542, %v543
        %v547 = vunpack.c.l.s4 1983009808
        %v548 = vunpack.c.0.s8 %v547
        %v549 = vlaneseq
        %v550 = vshrl.u32 %v549, 7
        %v551 = vsub.s32 %v548, %v550
        %v552 = vrot.slane %v544, %v551
        %v553 = vcombine.high %v552, %v552
        %v556 = vsel %vm247, %v552, 0.0
        %v557 = vsel %vm247, %v553, 0.0
        %v558 = vadd.f32 %v556, %v557
        %559 = vadd.xlane.f32.xlu0 %v558
        %v560 = vpop.xlane.xlu0 %559
        %v561 = vrot.slane %v560, 4
        %v562 = vadd.f32 %v560, %v561
        %v563 = vrot.slane %v562, 2
        %v564 = vadd.f32 %v562, %v563
        %v565 = vrot.slane %v564, 1
        %v566 = vadd.f32 %v564, %v565
        %s567 = vtos %v566
        %v568 = vmul.f32 %v514, %v514
        %v569 = vmul.f32 %v515, %v515
        %v570 = vadd.f32 %v568, %v569
        %v573 = vunpack.c.l.s4 1983009808
        %v574 = vunpack.c.0.s8 %v573
        %v575 = vlaneseq
        %v576 = vshrl.u32 %v575, 7
        %v577 = vsub.s32 %v574, %v576
        %v578 = vrot.slane %v570, %v577
        %v579 = vcombine.high %v578, %v578
        %v582 = vsel %vm247, %v578, 0.0
        %v583 = vsel %vm247, %v579, 0.0
        %v584 = vadd.f32 %v582, %v583
        %585 = vadd.xlane.f32.xlu0 %v584
        %v586 = vpop.xlane.xlu0 %585
        %v587 = vrot.slane %v586, 4
        %v588 = vadd.f32 %v586, %v587
        %v589 = vrot.slane %v588, 2
        %v590 = vadd.f32 %v588, %v589
        %v591 = vrot.slane %v590, 1
        %v592 = vadd.f32 %v590, %v591
        %s593 = vtos %v592
        %p594 = scmp.ne.f32.partialorder %s541, 0.0
        %s595 = scalar_select %p594, %s541, 1.0
        %v596 = vstv %s595
        %v597 = vrcp.pop %v596
        %s598 = vtos %v597
        %s599 = smul.f32 %s479, %s598
        %s600 = scalar_select %p511, %s599, 0.0
        %v601 = vstv %s600
        %v602 = vmul.f32 %v601, %v514
        %v603 = vsub.f32 %v471, %v602
        %v604 = vmul.f32 %v601, %v515
        %v605 = vsub.f32 %v473, %v604
        %s606 = smul.f32 %s600, 2.0
        %s607 = smul.f32 %s606, %s567
        %s608 = ssub.f32 %s479, %s607
        %s609 = smul.f32 %s600, %s600
        %s610 = smul.f32 %s609, %s593
        %s611 = sadd.f32 %s608, %s610
        %p612 = scmp.ne.f32.partialorder %s479, 0.0
        %s613 = scalar_select %p612, %s479, 1.0
        %v614 = vstv %s613
        %v615 = vrcp.pop %v614
        %s616 = vtos %v615
        %s617 = smul.f32 %s611, %s616
        %s618 = scalar_select %p511, %s617, 1.0
        %v619 = vstv %s513
        %v620 = vmul.f32 %v619, %v603
        %v621 = vstv %s618
        %v622 = vmul.f32 %v621, %v491
        %v623 = vadd.f32 %v620, %v622
        %v624 = vmul.f32 %v619, %v605
        %v625 = vmul.f32 %v621, %v494
        %v626 = vadd.f32 %v624, %v625
        %v627 = vmul.f32 %v268, %v507
        %v628 = vmul.f32 %v268, %v510
        %v629 = vmul.f32 %v601, %v507
        %v630 = vadd.f32 %v498, %v629
        %v631 = vmul.f32 %v601, %v510
        %v632 = vadd.f32 %v500, %v631
        %v633 = vmul.f32 %v601, %v627
        %v634 = vsub.f32 %v502, %v633
        %v635 = vmul.f32 %v601, %v628
        %v636 = vsub.f32 %v504, %v635
        %v637 = vmul.f32 %v619, %v634
        %v638 = vmul.f32 %v621, %v507
        %v639 = vadd.f32 %v637, %v638
        %v640 = vmul.f32 %v619, %v636
        %v641 = vmul.f32 %v621, %v510
        %v642 = vadd.f32 %v640, %v641
        %p643 = scmp.gt.f32.partialorder %s611, 1e-10
        %s644 = scalar_select %p643, 1, 0
        %s645 = scvt.s32.f32 %s644
        %v646 = vmul.f32 %v219, %v623
        %v647 = vmul.f32 %v219, %v626
        %v648 = vmul.f32 %v623, %v646
        %v649 = vmul.f32 %v626, %v647
        %v650 = vadd.f32 %v648, %v649
        %v653 = vunpack.c.l.s4 1983009808
        %v654 = vunpack.c.0.s8 %v653
        %v655 = vlaneseq
        %v656 = vshrl.u32 %v655, 7
        %v657 = vsub.s32 %v654, %v656
        %v658 = vrot.slane %v650, %v657
        %v659 = vcombine.high %v658, %v658
        %v662 = vsel %vm247, %v658, 0.0
        %v663 = vsel %vm247, %v659, 0.0
        %v664 = vadd.f32 %v662, %v663
        %665 = vadd.xlane.f32.xlu0 %v664
        %v666 = vpop.xlane.xlu0 %665
        %v667 = vrot.slane %v666, 4
        %v668 = vadd.f32 %v666, %v667
        %v669 = vrot.slane %v668, 2
        %v670 = vadd.f32 %v668, %v669
        %v671 = vrot.slane %v670, 1
        %v672 = vadd.f32 %v670, %v671
        %s673 = vtos %v672
        %v674 = vmul.f32 %v603, %v646
        %v675 = vmul.f32 %v605, %v647
        %v676 = vadd.f32 %v674, %v675
        %v679 = vunpack.c.l.s4 1983009808
        %v680 = vunpack.c.0.s8 %v679
        %v681 = vlaneseq
        %v682 = vshrl.u32 %v681, 7
        %v683 = vsub.s32 %v680, %v682
        %v684 = vrot.slane %v676, %v683
        %v685 = vcombine.high %v684, %v684
        %v688 = vsel %vm247, %v684, 0.0
        %v689 = vsel %vm247, %v685, 0.0
        %v690 = vadd.f32 %v688, %v689
        %691 = vadd.xlane.f32.xlu0 %v690
        %v692 = vpop.xlane.xlu0 %691
        %v693 = vrot.slane %v692, 4
        %v694 = vadd.f32 %v692, %v693
        %v695 = vrot.slane %v694, 2
        %v696 = vadd.f32 %v694, %v695
        %v697 = vrot.slane %v696, 1
        %v698 = vadd.f32 %v696, %v697
        %s699 = vtos %v698
        %v700 = vmul.f32 %v646, %v646
        %v701 = vmul.f32 %v647, %v647
        %v702 = vadd.f32 %v700, %v701
        %v705 = vunpack.c.l.s4 1983009808
        %v706 = vunpack.c.0.s8 %v705
        %v707 = vlaneseq
        %v708 = vshrl.u32 %v707, 7
        %v709 = vsub.s32 %v706, %v708
        %v710 = vrot.slane %v702, %v709
        %v711 = vcombine.high %v710, %v710
        %v714 = vsel %vm247, %v710, 0.0
        %v715 = vsel %vm247, %v711, 0.0
        %v716 = vadd.f32 %v714, %v715
        %717 = vadd.xlane.f32.xlu0 %v716
        %v718 = vpop.xlane.xlu0 %717
        %v719 = vrot.slane %v718, 4
        %v720 = vadd.f32 %v718, %v719
        %v721 = vrot.slane %v720, 2
        %v722 = vadd.f32 %v720, %v721
        %v723 = vrot.slane %v722, 1
        %v724 = vadd.f32 %v722, %v723
        %s725 = vtos %v724
        %p726 = scmp.ne.f32.partialorder %s673, 0.0
        %s727 = scalar_select %p726, %s673, 1.0
        %v728 = vstv %s727
        %v729 = vrcp.pop %v728
        %s730 = vtos %v729
        %s731 = smul.f32 %s611, %s730
        %s732 = scalar_select %p643, %s731, 0.0
        %v733 = vstv %s732
        %v734 = vmul.f32 %v733, %v646
        %v735 = vsub.f32 %v603, %v734
        %v736 = vmul.f32 %v733, %v647
        %v737 = vsub.f32 %v605, %v736
        %s738 = smul.f32 %s732, 2.0
        %s739 = smul.f32 %s738, %s699
        %s740 = ssub.f32 %s611, %s739
        %s741 = smul.f32 %s732, %s732
        %s742 = smul.f32 %s741, %s725
        %s743 = sadd.f32 %s740, %s742
        %p744 = scmp.ne.f32.partialorder %s611, 0.0
        %s745 = scalar_select %p744, %s611, 1.0
        %v746 = vstv %s745
        %v747 = vrcp.pop %v746
        %s748 = vtos %v747
        %s749 = smul.f32 %s743, %s748
        %s750 = scalar_select %p643, %s749, 1.0
        %v751 = vstv %s645
        %v752 = vmul.f32 %v751, %v735
        %v753 = vstv %s750
        %v754 = vmul.f32 %v753, %v623
        %v755 = vadd.f32 %v752, %v754
        %v756 = vmul.f32 %v751, %v737
        %v757 = vmul.f32 %v753, %v626
        %v758 = vadd.f32 %v756, %v757
        %v759 = vmul.f32 %v268, %v639
        %v760 = vmul.f32 %v268, %v642
        %v761 = vmul.f32 %v733, %v639
        %v762 = vadd.f32 %v630, %v761
        %v763 = vmul.f32 %v733, %v642
        %v764 = vadd.f32 %v632, %v763
        %v765 = vmul.f32 %v733, %v759
        %v766 = vsub.f32 %v634, %v765
        %v767 = vmul.f32 %v733, %v760
        %v768 = vsub.f32 %v636, %v767
        %v769 = vmul.f32 %v751, %v766
        %v770 = vmul.f32 %v753, %v639
        %v771 = vadd.f32 %v769, %v770
        %v772 = vmul.f32 %v751, %v768
        %v773 = vmul.f32 %v753, %v642
        %v774 = vadd.f32 %v772, %v773
        %p775 = scmp.gt.f32.partialorder %s743, 1e-10
        %s776 = scalar_select %p775, 1, 0
        %s777 = scvt.s32.f32 %s776
        %v778 = vmul.f32 %v219, %v755
        %v779 = vmul.f32 %v219, %v758
        %v780 = vmul.f32 %v755, %v778
        %v781 = vmul.f32 %v758, %v779
        %v782 = vadd.f32 %v780, %v781
        %v785 = vunpack.c.l.s4 1983009808
        %v786 = vunpack.c.0.s8 %v785
        %v787 = vlaneseq
        %v788 = vshrl.u32 %v787, 7
        %v789 = vsub.s32 %v786, %v788
        %v790 = vrot.slane %v782, %v789
        %v791 = vcombine.high %v790, %v790
        %v794 = vsel %vm247, %v790, 0.0
        %v795 = vsel %vm247, %v791, 0.0
        %v796 = vadd.f32 %v794, %v795
        %797 = vadd.xlane.f32.xlu0 %v796
        %v798 = vpop.xlane.xlu0 %797
        %v799 = vrot.slane %v798, 4
        %v800 = vadd.f32 %v798, %v799
        %v801 = vrot.slane %v800, 2
        %v802 = vadd.f32 %v800, %v801
        %v803 = vrot.slane %v802, 1
        %v804 = vadd.f32 %v802, %v803
        %s805 = vtos %v804
        %v806 = vmul.f32 %v735, %v778
        %v807 = vmul.f32 %v737, %v779
        %v808 = vadd.f32 %v806, %v807
        %v811 = vunpack.c.l.s4 1983009808
        %v812 = vunpack.c.0.s8 %v811
        %v813 = vlaneseq
        %v814 = vshrl.u32 %v813, 7
        %v815 = vsub.s32 %v812, %v814
        %v816 = vrot.slane %v808, %v815
        %v817 = vcombine.high %v816, %v816
        %v820 = vsel %vm247, %v816, 0.0
        %v821 = vsel %vm247, %v817, 0.0
        %v822 = vadd.f32 %v820, %v821
        %823 = vadd.xlane.f32.xlu0 %v822
        %v824 = vpop.xlane.xlu0 %823
        %v825 = vrot.slane %v824, 4
        %v826 = vadd.f32 %v824, %v825
        %v827 = vrot.slane %v826, 2
        %v828 = vadd.f32 %v826, %v827
        %v829 = vrot.slane %v828, 1
        %v830 = vadd.f32 %v828, %v829
        %s831 = vtos %v830
        %v832 = vmul.f32 %v778, %v778
        %v833 = vmul.f32 %v779, %v779
        %v834 = vadd.f32 %v832, %v833
        %v837 = vunpack.c.l.s4 1983009808
        %v838 = vunpack.c.0.s8 %v837
        %v839 = vlaneseq
        %v840 = vshrl.u32 %v839, 7
        %v841 = vsub.s32 %v838, %v840
        %v842 = vrot.slane %v834, %v841
        %v843 = vcombine.high %v842, %v842
        %v846 = vsel %vm247, %v842, 0.0
        %v847 = vsel %vm247, %v843, 0.0
        %v848 = vadd.f32 %v846, %v847
        %849 = vadd.xlane.f32.xlu0 %v848
        %v850 = vpop.xlane.xlu0 %849
        %v851 = vrot.slane %v850, 4
        %v852 = vadd.f32 %v850, %v851
        %v853 = vrot.slane %v852, 2
        %v854 = vadd.f32 %v852, %v853
        %v855 = vrot.slane %v854, 1
        %v856 = vadd.f32 %v854, %v855
        %s857 = vtos %v856
        %p858 = scmp.ne.f32.partialorder %s805, 0.0
        %s859 = scalar_select %p858, %s805, 1.0
        %v860 = vstv %s859
        %v861 = vrcp.pop %v860
        %s862 = vtos %v861
        %s863 = smul.f32 %s743, %s862
        %s864 = scalar_select %p775, %s863, 0.0
        %v865 = vstv %s864
        %v866 = vmul.f32 %v865, %v778
        %v867 = vsub.f32 %v735, %v866
        %v868 = vmul.f32 %v865, %v779
        %v869 = vsub.f32 %v737, %v868
        %s870 = smul.f32 %s864, 2.0
        %s871 = smul.f32 %s870, %s831
        %s872 = ssub.f32 %s743, %s871
        %s873 = smul.f32 %s864, %s864
        %s874 = smul.f32 %s873, %s857
        %s875 = sadd.f32 %s872, %s874
        %p876 = scmp.ne.f32.partialorder %s743, 0.0
        %s877 = scalar_select %p876, %s743, 1.0
        %v878 = vstv %s877
        %v879 = vrcp.pop %v878
        %s880 = vtos %v879
        %s881 = smul.f32 %s875, %s880
        %s882 = scalar_select %p775, %s881, 1.0
        %v883 = vstv %s777
        %v884 = vmul.f32 %v883, %v867
        %v885 = vstv %s882
        %v886 = vmul.f32 %v885, %v755
        %v887 = vadd.f32 %v884, %v886
        %v888 = vmul.f32 %v883, %v869
        %v889 = vmul.f32 %v885, %v758
        %v890 = vadd.f32 %v888, %v889
        %v891 = vmul.f32 %v268, %v771
        %v892 = vmul.f32 %v268, %v774
        %v893 = vmul.f32 %v865, %v771
        %v894 = vadd.f32 %v762, %v893
        %v895 = vmul.f32 %v865, %v774
        %v896 = vadd.f32 %v764, %v895
        %v897 = vmul.f32 %v865, %v891
        %v898 = vsub.f32 %v766, %v897
        %v899 = vmul.f32 %v865, %v892
        %v900 = vsub.f32 %v768, %v899
        %v901 = vmul.f32 %v883, %v898
        %v902 = vmul.f32 %v885, %v771
        %v903 = vadd.f32 %v901, %v902
        %v904 = vmul.f32 %v883, %v900
        %v905 = vmul.f32 %v885, %v774
        %v906 = vadd.f32 %v904, %v905
        %p907 = scmp.gt.f32.partialorder %s875, 1e-10
        %s908 = scalar_select %p907, 1, 0
        %s909 = scvt.s32.f32 %s908
        %v910 = vmul.f32 %v219, %v887
        %v911 = vmul.f32 %v219, %v890
        %v912 = vmul.f32 %v887, %v910
        %v913 = vmul.f32 %v890, %v911
        %v914 = vadd.f32 %v912, %v913
        %v917 = vunpack.c.l.s4 1983009808
        %v918 = vunpack.c.0.s8 %v917
        %v919 = vlaneseq
        %v920 = vshrl.u32 %v919, 7
        %v921 = vsub.s32 %v918, %v920
        %v922 = vrot.slane %v914, %v921
        %v923 = vcombine.high %v922, %v922
        %v926 = vsel %vm247, %v922, 0.0
        %v927 = vsel %vm247, %v923, 0.0
        %v928 = vadd.f32 %v926, %v927
        %929 = vadd.xlane.f32.xlu0 %v928
        %v930 = vpop.xlane.xlu0 %929
        %v931 = vrot.slane %v930, 4
        %v932 = vadd.f32 %v930, %v931
        %v933 = vrot.slane %v932, 2
        %v934 = vadd.f32 %v932, %v933
        %v935 = vrot.slane %v934, 1
        %v936 = vadd.f32 %v934, %v935
        %s937 = vtos %v936
        %v938 = vmul.f32 %v867, %v910
        %v939 = vmul.f32 %v869, %v911
        %v940 = vadd.f32 %v938, %v939
        %v943 = vunpack.c.l.s4 1983009808
        %v944 = vunpack.c.0.s8 %v943
        %v945 = vlaneseq
        %v946 = vshrl.u32 %v945, 7
        %v947 = vsub.s32 %v944, %v946
        %v948 = vrot.slane %v940, %v947
        %v949 = vcombine.high %v948, %v948
        %v952 = vsel %vm247, %v948, 0.0
        %v953 = vsel %vm247, %v949, 0.0
        %v954 = vadd.f32 %v952, %v953
        %955 = vadd.xlane.f32.xlu0 %v954
        %v956 = vpop.xlane.xlu0 %955
        %v957 = vrot.slane %v956, 4
        %v958 = vadd.f32 %v956, %v957
        %v959 = vrot.slane %v958, 2
        %v960 = vadd.f32 %v958, %v959
        %v961 = vrot.slane %v960, 1
        %v962 = vadd.f32 %v960, %v961
        %s963 = vtos %v962
        %v964 = vmul.f32 %v910, %v910
        %v965 = vmul.f32 %v911, %v911
        %v966 = vadd.f32 %v964, %v965
        %v969 = vunpack.c.l.s4 1983009808
        %v970 = vunpack.c.0.s8 %v969
        %v971 = vlaneseq
        %v972 = vshrl.u32 %v971, 7
        %v973 = vsub.s32 %v970, %v972
        %v974 = vrot.slane %v966, %v973
        %v975 = vcombine.high %v974, %v974
        %v978 = vsel %vm247, %v974, 0.0
        %v979 = vsel %vm247, %v975, 0.0
        %v980 = vadd.f32 %v978, %v979
        %981 = vadd.xlane.f32.xlu0 %v980
        %v982 = vpop.xlane.xlu0 %981
        %v983 = vrot.slane %v982, 4
        %v984 = vadd.f32 %v982, %v983
        %v985 = vrot.slane %v984, 2
        %v986 = vadd.f32 %v984, %v985
        %v987 = vrot.slane %v986, 1
        %v988 = vadd.f32 %v986, %v987
        %s989 = vtos %v988
        %p990 = scmp.ne.f32.partialorder %s937, 0.0
        %s991 = scalar_select %p990, %s937, 1.0
        %v992 = vstv %s991
        %v993 = vrcp.pop %v992
        %s994 = vtos %v993
        %s995 = smul.f32 %s875, %s994
        %s996 = scalar_select %p907, %s995, 0.0
        %v997 = vstv %s996
        %v998 = vmul.f32 %v997, %v910
        %v999 = vsub.f32 %v867, %v998
        %v1000 = vmul.f32 %v997, %v911
        %v1001 = vsub.f32 %v869, %v1000
        %s1002 = smul.f32 %s996, 2.0
        %s1003 = smul.f32 %s1002, %s963
        %s1004 = ssub.f32 %s875, %s1003
        %s1005 = smul.f32 %s996, %s996
        %s1006 = smul.f32 %s1005, %s989
        %s1007 = sadd.f32 %s1004, %s1006
        %p1008 = scmp.ne.f32.partialorder %s875, 0.0
        %s1009 = scalar_select %p1008, %s875, 1.0
        %v1010 = vstv %s1009
        %v1011 = vrcp.pop %v1010
        %s1012 = vtos %v1011
        %s1013 = smul.f32 %s1007, %s1012
        %s1014 = scalar_select %p907, %s1013, 1.0
        %v1015 = vstv %s909
        %v1016 = vmul.f32 %v1015, %v999
        %v1017 = vstv %s1014
        %v1018 = vmul.f32 %v1017, %v887
        %v1019 = vadd.f32 %v1016, %v1018
        %v1020 = vmul.f32 %v1015, %v1001
        %v1021 = vmul.f32 %v1017, %v890
        %v1022 = vadd.f32 %v1020, %v1021
        %v1023 = vmul.f32 %v268, %v903
        %v1024 = vmul.f32 %v268, %v906
        %v1025 = vmul.f32 %v997, %v903
        %v1026 = vadd.f32 %v894, %v1025
        %v1027 = vmul.f32 %v997, %v906
        %v1028 = vadd.f32 %v896, %v1027
        %v1029 = vmul.f32 %v997, %v1023
        %v1030 = vsub.f32 %v898, %v1029
        %v1031 = vmul.f32 %v997, %v1024
        %v1032 = vsub.f32 %v900, %v1031
        %v1033 = vmul.f32 %v1015, %v1030
        %v1034 = vmul.f32 %v1017, %v903
        %v1035 = vadd.f32 %v1033, %v1034
        %v1036 = vmul.f32 %v1015, %v1032
        %v1037 = vmul.f32 %v1017, %v906
        %v1038 = vadd.f32 %v1036, %v1037
        %p1039 = scmp.gt.f32.partialorder %s1007, 1e-10
        %s1040 = scalar_select %p1039, 1, 0
        %s1041 = scvt.s32.f32 %s1040
        %v1042 = vmul.f32 %v219, %v1019
        %v1043 = vmul.f32 %v219, %v1022
        %v1044 = vmul.f32 %v1019, %v1042
        %v1045 = vmul.f32 %v1022, %v1043
        %v1046 = vadd.f32 %v1044, %v1045
        %v1049 = vunpack.c.l.s4 1983009808
        %v1050 = vunpack.c.0.s8 %v1049
        %v1051 = vlaneseq
        %v1052 = vshrl.u32 %v1051, 7
        %v1053 = vsub.s32 %v1050, %v1052
        %v1054 = vrot.slane %v1046, %v1053
        %v1055 = vcombine.high %v1054, %v1054
        %v1058 = vsel %vm247, %v1054, 0.0
        %v1059 = vsel %vm247, %v1055, 0.0
        %v1060 = vadd.f32 %v1058, %v1059
        %1061 = vadd.xlane.f32.xlu0 %v1060
        %v1062 = vpop.xlane.xlu0 %1061
        %v1063 = vrot.slane %v1062, 4
        %v1064 = vadd.f32 %v1062, %v1063
        %v1065 = vrot.slane %v1064, 2
        %v1066 = vadd.f32 %v1064, %v1065
        %v1067 = vrot.slane %v1066, 1
        %v1068 = vadd.f32 %v1066, %v1067
        %s1069 = vtos %v1068
        %v1070 = vmul.f32 %v999, %v1042
        %v1071 = vmul.f32 %v1001, %v1043
        %v1072 = vadd.f32 %v1070, %v1071
        %v1075 = vunpack.c.l.s4 1983009808
        %v1076 = vunpack.c.0.s8 %v1075
        %v1077 = vlaneseq
        %v1078 = vshrl.u32 %v1077, 7
        %v1079 = vsub.s32 %v1076, %v1078
        %v1080 = vrot.slane %v1072, %v1079
        %v1081 = vcombine.high %v1080, %v1080
        %v1084 = vsel %vm247, %v1080, 0.0
        %v1085 = vsel %vm247, %v1081, 0.0
        %v1086 = vadd.f32 %v1084, %v1085
        %1087 = vadd.xlane.f32.xlu0 %v1086
        %v1088 = vpop.xlane.xlu0 %1087
        %v1089 = vrot.slane %v1088, 4
        %v1090 = vadd.f32 %v1088, %v1089
        %v1091 = vrot.slane %v1090, 2
        %v1092 = vadd.f32 %v1090, %v1091
        %v1093 = vrot.slane %v1092, 1
        %v1094 = vadd.f32 %v1092, %v1093
        %s1095 = vtos %v1094
        %v1096 = vmul.f32 %v1042, %v1042
        %v1097 = vmul.f32 %v1043, %v1043
        %v1098 = vadd.f32 %v1096, %v1097
        %v1101 = vunpack.c.l.s4 1983009808
        %v1102 = vunpack.c.0.s8 %v1101
        %v1103 = vlaneseq
        %v1104 = vshrl.u32 %v1103, 7
        %v1105 = vsub.s32 %v1102, %v1104
        %v1106 = vrot.slane %v1098, %v1105
        %v1107 = vcombine.high %v1106, %v1106
        %v1110 = vsel %vm247, %v1106, 0.0
        %v1111 = vsel %vm247, %v1107, 0.0
        %v1112 = vadd.f32 %v1110, %v1111
        %1113 = vadd.xlane.f32.xlu0 %v1112
        %v1114 = vpop.xlane.xlu0 %1113
        %v1115 = vrot.slane %v1114, 4
        %v1116 = vadd.f32 %v1114, %v1115
        %v1117 = vrot.slane %v1116, 2
        %v1118 = vadd.f32 %v1116, %v1117
        %v1119 = vrot.slane %v1118, 1
        %v1120 = vadd.f32 %v1118, %v1119
        %s1121 = vtos %v1120
        %p1122 = scmp.ne.f32.partialorder %s1069, 0.0
        %s1123 = scalar_select %p1122, %s1069, 1.0
        %v1124 = vstv %s1123
        %v1125 = vrcp.pop %v1124
        %s1126 = vtos %v1125
        %s1127 = smul.f32 %s1007, %s1126
        %s1128 = scalar_select %p1039, %s1127, 0.0
        %v1129 = vstv %s1128
        %v1130 = vmul.f32 %v1129, %v1042
        %v1131 = vsub.f32 %v999, %v1130
        %v1132 = vmul.f32 %v1129, %v1043
        %v1133 = vsub.f32 %v1001, %v1132
        %s1134 = smul.f32 %s1128, 2.0
        %s1135 = smul.f32 %s1134, %s1095
        %s1136 = ssub.f32 %s1007, %s1135
        %s1137 = smul.f32 %s1128, %s1128
        %s1138 = smul.f32 %s1137, %s1121
        %s1139 = sadd.f32 %s1136, %s1138
        %p1140 = scmp.ne.f32.partialorder %s1007, 0.0
        %s1141 = scalar_select %p1140, %s1007, 1.0
        %v1142 = vstv %s1141
        %v1143 = vrcp.pop %v1142
        %s1144 = vtos %v1143
        %s1145 = smul.f32 %s1139, %s1144
        %s1146 = scalar_select %p1039, %s1145, 1.0
        %v1147 = vstv %s1041
        %v1148 = vmul.f32 %v1147, %v1131
        %v1149 = vstv %s1146
        %v1150 = vmul.f32 %v1149, %v1019
        %v1151 = vadd.f32 %v1148, %v1150
        %v1152 = vmul.f32 %v1147, %v1133
        %v1153 = vmul.f32 %v1149, %v1022
        %v1154 = vadd.f32 %v1152, %v1153
        %v1155 = vmul.f32 %v268, %v1035
        %v1156 = vmul.f32 %v268, %v1038
        %v1157 = vmul.f32 %v1129, %v1035
        %v1158 = vadd.f32 %v1026, %v1157
        %v1159 = vmul.f32 %v1129, %v1038
        %v1160 = vadd.f32 %v1028, %v1159
        %v1161 = vmul.f32 %v1129, %v1155
        %v1162 = vsub.f32 %v1030, %v1161
        %v1163 = vmul.f32 %v1129, %v1156
        %v1164 = vsub.f32 %v1032, %v1163
        %v1165 = vmul.f32 %v1147, %v1162
        %v1166 = vmul.f32 %v1149, %v1035
        %v1167 = vadd.f32 %v1165, %v1166
        %v1168 = vmul.f32 %v1147, %v1164
        %v1169 = vmul.f32 %v1149, %v1038
        %v1170 = vadd.f32 %v1168, %v1169
        %p1171 = scmp.gt.f32.partialorder %s1139, 1e-10
        %s1172 = scalar_select %p1171, 1, 0
        %s1173 = scvt.s32.f32 %s1172
        %v1174 = vmul.f32 %v219, %v1151
        %v1175 = vmul.f32 %v219, %v1154
        %v1176 = vmul.f32 %v1151, %v1174
        %v1177 = vmul.f32 %v1154, %v1175
        %v1178 = vadd.f32 %v1176, %v1177
        %v1181 = vunpack.c.l.s4 1983009808
        %v1182 = vunpack.c.0.s8 %v1181
        %v1183 = vlaneseq
        %v1184 = vshrl.u32 %v1183, 7
        %v1185 = vsub.s32 %v1182, %v1184
        %v1186 = vrot.slane %v1178, %v1185
        %v1187 = vcombine.high %v1186, %v1186
        %v1190 = vsel %vm247, %v1186, 0.0
        %v1191 = vsel %vm247, %v1187, 0.0
        %v1192 = vadd.f32 %v1190, %v1191
        %1193 = vadd.xlane.f32.xlu0 %v1192
        %v1194 = vpop.xlane.xlu0 %1193
        %v1195 = vrot.slane %v1194, 4
        %v1196 = vadd.f32 %v1194, %v1195
        %v1197 = vrot.slane %v1196, 2
        %v1198 = vadd.f32 %v1196, %v1197
        %v1199 = vrot.slane %v1198, 1
        %v1200 = vadd.f32 %v1198, %v1199
        %s1201 = vtos %v1200
        %v1202 = vmul.f32 %v1131, %v1174
        %v1203 = vmul.f32 %v1133, %v1175
        %v1204 = vadd.f32 %v1202, %v1203
        %v1207 = vunpack.c.l.s4 1983009808
        %v1208 = vunpack.c.0.s8 %v1207
        %v1209 = vlaneseq
        %v1210 = vshrl.u32 %v1209, 7
        %v1211 = vsub.s32 %v1208, %v1210
        %v1212 = vrot.slane %v1204, %v1211
        %v1213 = vcombine.high %v1212, %v1212
        %v1216 = vsel %vm247, %v1212, 0.0
        %v1217 = vsel %vm247, %v1213, 0.0
        %v1218 = vadd.f32 %v1216, %v1217
        %1219 = vadd.xlane.f32.xlu0 %v1218
        %v1220 = vpop.xlane.xlu0 %1219
        %v1221 = vrot.slane %v1220, 4
        %v1222 = vadd.f32 %v1220, %v1221
        %v1223 = vrot.slane %v1222, 2
        %v1224 = vadd.f32 %v1222, %v1223
        %v1225 = vrot.slane %v1224, 1
        %v1226 = vadd.f32 %v1224, %v1225
        %s1227 = vtos %v1226
        %v1228 = vmul.f32 %v1174, %v1174
        %v1229 = vmul.f32 %v1175, %v1175
        %v1230 = vadd.f32 %v1228, %v1229
        %v1233 = vunpack.c.l.s4 1983009808
        %v1234 = vunpack.c.0.s8 %v1233
        %v1235 = vlaneseq
        %v1236 = vshrl.u32 %v1235, 7
        %v1237 = vsub.s32 %v1234, %v1236
        %v1238 = vrot.slane %v1230, %v1237
        %v1239 = vcombine.high %v1238, %v1238
        %v1242 = vsel %vm247, %v1238, 0.0
        %v1243 = vsel %vm247, %v1239, 0.0
        %v1244 = vadd.f32 %v1242, %v1243
        %1245 = vadd.xlane.f32.xlu0 %v1244
        %v1246 = vpop.xlane.xlu0 %1245
        %v1247 = vrot.slane %v1246, 4
        %v1248 = vadd.f32 %v1246, %v1247
        %v1249 = vrot.slane %v1248, 2
        %v1250 = vadd.f32 %v1248, %v1249
        %v1251 = vrot.slane %v1250, 1
        %v1252 = vadd.f32 %v1250, %v1251
        %s1253 = vtos %v1252
        %p1254 = scmp.ne.f32.partialorder %s1201, 0.0
        %s1255 = scalar_select %p1254, %s1201, 1.0
        %v1256 = vstv %s1255
        %v1257 = vrcp.pop %v1256
        %s1258 = vtos %v1257
        %s1259 = smul.f32 %s1139, %s1258
        %s1260 = scalar_select %p1171, %s1259, 0.0
        %v1261 = vstv %s1260
        %v1262 = vmul.f32 %v1261, %v1174
        %v1263 = vsub.f32 %v1131, %v1262
        %v1264 = vmul.f32 %v1261, %v1175
        %v1265 = vsub.f32 %v1133, %v1264
        %s1266 = smul.f32 %s1260, 2.0
        %s1267 = smul.f32 %s1266, %s1227
        %s1268 = ssub.f32 %s1139, %s1267
        %s1269 = smul.f32 %s1260, %s1260
        %s1270 = smul.f32 %s1269, %s1253
        %s1271 = sadd.f32 %s1268, %s1270
        %p1272 = scmp.ne.f32.partialorder %s1139, 0.0
        %s1273 = scalar_select %p1272, %s1139, 1.0
        %v1274 = vstv %s1273
        %v1275 = vrcp.pop %v1274
        %s1276 = vtos %v1275
        %s1277 = smul.f32 %s1271, %s1276
        %s1278 = scalar_select %p1171, %s1277, 1.0
        %v1279 = vstv %s1173
        %v1280 = vmul.f32 %v1279, %v1263
        %v1281 = vstv %s1278
        %v1282 = vmul.f32 %v1281, %v1151
        %v1283 = vadd.f32 %v1280, %v1282
        %v1284 = vmul.f32 %v1279, %v1265
        %v1285 = vmul.f32 %v1281, %v1154
        %v1286 = vadd.f32 %v1284, %v1285
        %v1287 = vmul.f32 %v268, %v1167
        %v1288 = vmul.f32 %v268, %v1170
        %v1289 = vmul.f32 %v1261, %v1167
        %v1290 = vadd.f32 %v1158, %v1289
        %v1291 = vmul.f32 %v1261, %v1170
        %v1292 = vadd.f32 %v1160, %v1291
        %v1293 = vmul.f32 %v1261, %v1287
        %v1294 = vsub.f32 %v1162, %v1293
        %v1295 = vmul.f32 %v1261, %v1288
        %v1296 = vsub.f32 %v1164, %v1295
        %v1297 = vmul.f32 %v1279, %v1294
        %v1298 = vmul.f32 %v1281, %v1167
        %v1299 = vadd.f32 %v1297, %v1298
        %v1300 = vmul.f32 %v1279, %v1296
        %v1301 = vmul.f32 %v1281, %v1170
        %v1302 = vadd.f32 %v1300, %v1301
        %p1303 = scmp.gt.f32.partialorder %s1271, 1e-10
        %s1304 = scalar_select %p1303, 1, 0
        %s1305 = scvt.s32.f32 %s1304
        %v1306 = vmul.f32 %v219, %v1283
        %v1307 = vmul.f32 %v219, %v1286
        %v1308 = vmul.f32 %v1283, %v1306
        %v1309 = vmul.f32 %v1286, %v1307
        %v1310 = vadd.f32 %v1308, %v1309
        %v1313 = vunpack.c.l.s4 1983009808
        %v1314 = vunpack.c.0.s8 %v1313
        %v1315 = vlaneseq
        %v1316 = vshrl.u32 %v1315, 7
        %v1317 = vsub.s32 %v1314, %v1316
        %v1318 = vrot.slane %v1310, %v1317
        %v1319 = vcombine.high %v1318, %v1318
        %v1322 = vsel %vm247, %v1318, 0.0
        %v1323 = vsel %vm247, %v1319, 0.0
        %v1324 = vadd.f32 %v1322, %v1323
        %1325 = vadd.xlane.f32.xlu0 %v1324
        %v1326 = vpop.xlane.xlu0 %1325
        %v1327 = vrot.slane %v1326, 4
        %v1328 = vadd.f32 %v1326, %v1327
        %v1329 = vrot.slane %v1328, 2
        %v1330 = vadd.f32 %v1328, %v1329
        %v1331 = vrot.slane %v1330, 1
        %v1332 = vadd.f32 %v1330, %v1331
        %s1333 = vtos %v1332
        %v1334 = vmul.f32 %v1263, %v1306
        %v1335 = vmul.f32 %v1265, %v1307
        %v1336 = vadd.f32 %v1334, %v1335
        %v1339 = vunpack.c.l.s4 1983009808
        %v1340 = vunpack.c.0.s8 %v1339
        %v1341 = vlaneseq
        %v1342 = vshrl.u32 %v1341, 7
        %v1343 = vsub.s32 %v1340, %v1342
        %v1344 = vrot.slane %v1336, %v1343
        %v1345 = vcombine.high %v1344, %v1344
        %v1348 = vsel %vm247, %v1344, 0.0
        %v1349 = vsel %vm247, %v1345, 0.0
        %v1350 = vadd.f32 %v1348, %v1349
        %1351 = vadd.xlane.f32.xlu0 %v1350
        %v1352 = vpop.xlane.xlu0 %1351
        %v1353 = vrot.slane %v1352, 4
        %v1354 = vadd.f32 %v1352, %v1353
        %v1355 = vrot.slane %v1354, 2
        %v1356 = vadd.f32 %v1354, %v1355
        %v1357 = vrot.slane %v1356, 1
        %v1358 = vadd.f32 %v1356, %v1357
        %s1359 = vtos %v1358
        %v1360 = vmul.f32 %v1306, %v1306
        %v1361 = vmul.f32 %v1307, %v1307
        %v1362 = vadd.f32 %v1360, %v1361
        %v1365 = vunpack.c.l.s4 1983009808
        %v1366 = vunpack.c.0.s8 %v1365
        %v1367 = vlaneseq
        %v1368 = vshrl.u32 %v1367, 7
        %v1369 = vsub.s32 %v1366, %v1368
        %v1370 = vrot.slane %v1362, %v1369
        %v1371 = vcombine.high %v1370, %v1370
        %v1374 = vsel %vm247, %v1370, 0.0
        %v1375 = vsel %vm247, %v1371, 0.0
        %v1376 = vadd.f32 %v1374, %v1375
        %1377 = vadd.xlane.f32.xlu0 %v1376
        %v1378 = vpop.xlane.xlu0 %1377
        %v1379 = vrot.slane %v1378, 4
        %v1380 = vadd.f32 %v1378, %v1379
        %v1381 = vrot.slane %v1380, 2
        %v1382 = vadd.f32 %v1380, %v1381
        %v1383 = vrot.slane %v1382, 1
        %v1384 = vadd.f32 %v1382, %v1383
        %s1385 = vtos %v1384
        %p1386 = scmp.ne.f32.partialorder %s1333, 0.0
        %s1387 = scalar_select %p1386, %s1333, 1.0
        %v1388 = vstv %s1387
        %v1389 = vrcp.pop %v1388
        %s1390 = vtos %v1389
        %s1391 = smul.f32 %s1271, %s1390
        %s1392 = scalar_select %p1303, %s1391, 0.0
        %v1393 = vstv %s1392
        %v1394 = vmul.f32 %v1393, %v1306
        %v1395 = vsub.f32 %v1263, %v1394
        %v1396 = vmul.f32 %v1393, %v1307
        %v1397 = vsub.f32 %v1265, %v1396
        %s1398 = smul.f32 %s1392, 2.0
        %s1399 = smul.f32 %s1398, %s1359
        %s1400 = ssub.f32 %s1271, %s1399
        %s1401 = smul.f32 %s1392, %s1392
        %s1402 = smul.f32 %s1401, %s1385
        %s1403 = sadd.f32 %s1400, %s1402
        %p1404 = scmp.ne.f32.partialorder %s1271, 0.0
        %s1405 = scalar_select %p1404, %s1271, 1.0
        %v1406 = vstv %s1405
        %v1407 = vrcp.pop %v1406
        %s1408 = vtos %v1407
        %s1409 = smul.f32 %s1403, %s1408
        %s1410 = scalar_select %p1303, %s1409, 1.0
        %v1411 = vstv %s1305
        %v1412 = vmul.f32 %v1411, %v1395
        %v1413 = vstv %s1410
        %v1414 = vmul.f32 %v1413, %v1283
        %v1415 = vadd.f32 %v1412, %v1414
        %v1416 = vmul.f32 %v1411, %v1397
        %v1417 = vmul.f32 %v1413, %v1286
        %v1418 = vadd.f32 %v1416, %v1417
        %v1419 = vmul.f32 %v268, %v1299
        %v1420 = vmul.f32 %v268, %v1302
        %v1421 = vmul.f32 %v1393, %v1299
        %v1422 = vadd.f32 %v1290, %v1421
        %v1423 = vmul.f32 %v1393, %v1302
        %v1424 = vadd.f32 %v1292, %v1423
        %v1425 = vmul.f32 %v1393, %v1419
        %v1426 = vsub.f32 %v1294, %v1425
        %v1427 = vmul.f32 %v1393, %v1420
        %v1428 = vsub.f32 %v1296, %v1427
        %v1429 = vmul.f32 %v1411, %v1426
        %v1430 = vmul.f32 %v1413, %v1299
        %v1431 = vadd.f32 %v1429, %v1430
        %v1432 = vmul.f32 %v1411, %v1428
        %v1433 = vmul.f32 %v1413, %v1302
        %v1434 = vadd.f32 %v1432, %v1433
        %p1435 = scmp.gt.f32.partialorder %s1403, 1e-10
        %v1436 = vmul.f32 %v219, %v1415
        %v1437 = vmul.f32 %v219, %v1418
        %v1438 = vmul.f32 %v1415, %v1436
        %v1439 = vmul.f32 %v1418, %v1437
        %v1440 = vadd.f32 %v1438, %v1439
        %v1443 = vunpack.c.l.s4 1983009808
        %v1444 = vunpack.c.0.s8 %v1443
        %v1445 = vlaneseq
        %v1446 = vshrl.u32 %v1445, 7
        %v1447 = vsub.s32 %v1444, %v1446
        %v1448 = vrot.slane %v1440, %v1447
        %v1449 = vcombine.high %v1448, %v1448
        %v1452 = vsel %vm247, %v1448, 0.0
        %v1453 = vsel %vm247, %v1449, 0.0
        %v1454 = vadd.f32 %v1452, %v1453
        %1455 = vadd.xlane.f32.xlu0 %v1454
        %v1456 = vpop.xlane.xlu0 %1455
        %v1457 = vrot.slane %v1456, 4
        %v1458 = vadd.f32 %v1456, %v1457
        %v1459 = vrot.slane %v1458, 2
        %v1460 = vadd.f32 %v1458, %v1459
        %v1461 = vrot.slane %v1460, 1
        %v1462 = vadd.f32 %v1460, %v1461
        %s1463 = vtos %v1462
        %p1464 = scmp.ne.f32.partialorder %s1463, 0.0
        %s1465 = scalar_select %p1464, %s1463, 1.0
        %v1466 = vstv %s1465
        %v1467 = vrcp.pop %v1466
        %s1468 = vtos %v1467
        %s1469 = smul.f32 %s1403, %s1468
        %s1470 = scalar_select %p1435, %s1469, 0.0
        %v1471 = vstv %s1470
        %v1472 = vmul.f32 %v1471, %v1431
        %v1473 = vadd.f32 %v1422, %v1472
        %v1474 = vmul.f32 %v1471, %v1434
        %v1475 = vadd.f32 %v1424, %v1474
        %v1476 = vlaneseq
        %vm1477 = vcmp.ge.s32.totalorder %v1476, 0
        %vm1478 = vcmp.lt.s32.totalorder %v1476, 256
        %vm1479 = vmand %vm1477, %vm1478
        %1480 = vst.msk [vmem:[%s205] sm:$0x3] %vm1479, %v1473
        %1481 = vst.msk [vmem:[%s212] sm:$0x3] %vm1479, %v1475
        %s1482 = sand.u32 %s95, 1
        %s1483 = scalar_lea.sflag [#allocation4], %s1482
        %s1484 = sand.u32 %s95, 1
        %s1485 = smul.addr %s1484, 2
        %s1486 = scalar_lea.vmem [#allocation7], %s1485
        %s1487 = sand.u32 %s121, 1
        %s1488 = scalar_lea.sflag [#allocation9], %s1487
        %s1489 = sand.u32 %s121, 1
        %s1490 = smul.addr %s1489, 2
        %s1491 = scalar_lea.vmem [#allocation8], %s1490
        // Predicated region
        $region41: #{tpu_custom_call.1} parent=31 // pred_check
          %p1492 = pneg %p105
        $region42: #{tpu_custom_call.1} parent=31 // pred_check_branch
          %1494 = sbr.rel (%p1492) target = $region44
        $region43: #{tpu_custom_call.1} parent=31 // pred_region
          %s1496 = ssub.s32 32, 32
          %1497 = vsyncadd %s1483, %s1496
          %s1498 = smul.addr %s24, 2
          %s1499 = smul.addr %s1498, 16
          %s1500 = scalar_lea.hbm %s3, %s1499
          %s1502 = sshll.u32 %s1486, 4
          %s1503 = int_to_ptr.vmem [resolvable:$true] %s1502
          %1505 = dma.vmem_to_hbm [thread:$0]  %s1503, 32, %s1500, %s1483
        $region44: #{tpu_custom_call.1} parent=31 // pred_fallthru
          _
        // Predicated region
        $region45: #{tpu_custom_call.1} parent=31 // pred_check
          %p1506 = pneg %p131
        $region46: #{tpu_custom_call.1} parent=31 // pred_check_branch
          %1508 = sbr.rel (%p1506) target = $region48
        $region47: #{tpu_custom_call.1} parent=31 // pred_region
          %s1510 = ssub.s32 32, 32
          %1511 = vsyncadd %s1488, %s1510
          %s1512 = smul.addr %s24, 2
          %s1513 = smul.addr %s1512, 16
          %s1514 = scalar_lea.hbm %s4, %s1513
          %s1516 = sshll.u32 %s1491, 4
          %s1517 = int_to_ptr.vmem [resolvable:$true] %s1516
          %1519 = dma.vmem_to_hbm [thread:$0]  %s1517, 32, %s1514, %s1488
        $region48: #{tpu_custom_call.1} parent=31 // pred_fallthru
          _
      $region32: #{tpu_custom_call.1} parent=5 // pred_fallthru
        _
      %p1520 = scmp.le.s32.totalorder 2, %s19
      // Predicated region
      $region49: #{tpu_custom_call.1} parent=5 // pred_check
        %p1521 = pneg %p1520
      $region50: #{tpu_custom_call.1} parent=5 // pred_check_branch
        %1523 = sbr.rel (%p1521) target = $region52
      $region51: #{tpu_custom_call.1} parent=5 // pred_region
        %s1524 = ssub.s32 %s19, 2
        // Predicated region
        $region53: #{tpu_custom_call.1} parent=51 // pred_check
          %p1525 = pneg %p111
        $region54: #{tpu_custom_call.1} parent=51 // pred_check_branch
          %1527 = sbr.rel (%p1525) target = $region56
        $region55: #{tpu_custom_call.1} parent=51 // pred_region
          %s1528 = sand.u32 %s96, 1
          %s1529 = scalar_lea.sflag [#allocation4], %s1528
          %s1530 = sand.u32 %s96, 1
          %s1531 = smul.addr %s1530, 2
          %s1532 = scalar_lea.vmem [#allocation7], %s1531
          %1533 = dma.done %s1529, 32
        $region56: #{tpu_custom_call.1} parent=51 // pred_fallthru
          _
        // Predicated region
        $region57: #{tpu_custom_call.1} parent=51 // pred_check
          %p1534 = pneg %p137
        $region58: #{tpu_custom_call.1} parent=51 // pred_check_branch
          %1536 = sbr.rel (%p1534) target = $region60
        $region59: #{tpu_custom_call.1} parent=51 // pred_region
          %s1537 = sand.u32 %s122, 1
          %s1538 = scalar_lea.sflag [#allocation9], %s1537
          %s1539 = sand.u32 %s122, 1
          %s1540 = smul.addr %s1539, 2
          %s1541 = scalar_lea.vmem [#allocation8], %s1540
          %1542 = dma.done %s1538, 32
        $region60: #{tpu_custom_call.1} parent=51 // pred_fallthru
          _
      $region52: #{tpu_custom_call.1} parent=5 // pred_fallthru
        _
    $region6: #{tpu_custom_call.1} parent=1 // loop_footer
      %s23 = sadd.s32 1, %s19
    $region7: #{tpu_custom_call.1} parent=1 // loop_footer_branch
      %18 = sbr.rel target = $region3
    $region8: #{tpu_custom_call.1} parent=1 // loop_exit
      _
    %1543 = vsyncpa [#allocation3], 1
    %s1544 = scalar_lea.sflag [#allocation3], 1
    %1545 = vsyncpa %s1544, 1
    %1546 = vsyncpa [#allocation6], 1
    %1547 = vsyncpa [#allocation4], 1
    %s1548 = scalar_lea.sflag [#allocation4], 1
    %1549 = vsyncpa %s1548, 1
    %1550 = vsyncpa [#allocation9], 1
    %s1551 = scalar_lea.sflag [#allocation9], 1
    %1552 = vsyncpa %s1551, 1

</llo_original>
